<compile_context>
chip_gen: v7x
topology: tpu7x:2x2x1
jax: 0.10.0
libtpu: 0.0.40
codegen_flags: <defaults>
</compile_context>

<pallas_src>
import functools
import math

import jax
import jax.numpy as jnp
from jax.experimental import pallas as pl
from jax.experimental.pallas import tpu as pltpu


def _gauss_taps(ks=7, sigma=1.0):
    c = (ks - 1) / 2.0
    w = [math.exp(-((i - c) ** 2) / (2.0 * sigma * sigma)) for i in range(ks)]
    s = sum(w)
    return tuple(wi / s for wi in w)


# ---------------------------------------------------------------------------
# Stage 1: netG (1x1x1 stand-in) + tanh + trans_label + trans_diff + separable
#          7x7x7 Gaussian blur (sigma=1, zero padding), one grid step / sample.
#          Layout: (X, Y*Z) with Y*Z on lanes (lane-dense).
# ---------------------------------------------------------------------------
def _gen_blur_kernel(wg_ref, bg_ref, img_ref, lab_ref, out_ref,
                     padx_ref, padyz_ref, *, X, Y, Z, taps, pad_rows, pad_lanes):
    YZ = Y * Z
    img = img_ref[0]                       # (X, YZ) f32
    lab = lab_ref[0]                       # (X, YZ) int32

    # trans_label: 3,5 -> 1 ; 4,6 -> 2
    tlab = jnp.where((lab == 3) | (lab == 5), 1, lab)
    tlab = jnp.where((lab == 4) | (lab == 6), 2, tlab)

    # netG stand-in (1x1x1 conv, Cin=1) + tanh, then trans_diff one-hot select
    # over label classes 1/3/5 (channels 0/1/2).  Cin=1 -> scalar FMA, no MXU.
    wg = wg_ref[...]                       # (3, 1)
    bg = bg_ref[...]                       # (3, 1)
    diff = jnp.zeros((X, YZ), jnp.float32)
    for j in range(3):
        dj = jnp.tanh(wg[j:j + 1, 0:1] * img + bg[j:j + 1, 0:1])
        diff = diff + dj * (tlab == (2 * j + 1)).astype(jnp.float32)

    ntap = len(taps)
    half = ntap // 2

    # ---- X pass: taps along sublanes; zero frame kept in VMEM scratch ------
    zrows = jnp.zeros((pad_rows, YZ), jnp.float32)
    padx_ref[0:pad_rows, :] = zrows
    padx_ref[pad_rows + X:2 * pad_rows + X, :] = zrows
    padx_ref[pad_rows:pad_rows + X, :] = diff          # aligned interior store
    a = taps[0] * padx_ref[pad_rows - half:pad_rows - half + X, :]
    for t in range(1, ntap):
        s0 = pad_rows - half + t
        a = a + taps[t] * padx_ref[s0:s0 + X, :]

    # ---- Y pass: taps are lane shifts by multiples of Z ---------------------
    zl = jnp.zeros((X, pad_lanes), jnp.float32)
    padyz_ref[:, 0:pad_lanes] = zl
    padyz_ref[:, pad_lanes + YZ:2 * pad_lanes + YZ] = zl
    padyz_ref[:, pad_lanes:pad_lanes + YZ] = a          # aligned interior store
    b = taps[0] * padyz_ref[:, pad_lanes - half * Z:pad_lanes - half * Z + YZ]
    for t in range(1, ntap):
        s0 = pad_lanes + (t - half) * Z
        b = b + taps[t] * padyz_ref[:, s0:s0 + YZ]

    # ---- Z pass: lane shifts of +-1..3, masked so Y rows do not bleed -------
    padyz_ref[:, pad_lanes:pad_lanes + YZ] = b
    zidx = jax.lax.broadcasted_iota(jnp.int32, (X, YZ), 1) % Z
    c = taps[half] * b
    for t in range(ntap):
        o = t - half
        if o == 0:
            continue
        s0 = pad_lanes + o
        shifted = padyz_ref[:, s0:s0 + YZ]
        valid = (zidx < (Z - o)) if o > 0 else (zidx >= (-o))
        c = c + taps[t] * jnp.where(valid, shifted, 0.0)

    out_ref[0] = c.astype(out_ref.dtype)


def generator_blur(img, lab, wG, bG, Y, Z, out_dtype=jnp.bfloat16):
    B, X, YZ = img.shape
    assert YZ == Y * Z
    taps = _gauss_taps(7, 1.0)
    pad_rows = 8
    pad_lanes = max(128, ((3 * Z + 127) // 128) * 128)
    kern = functools.partial(_gen_blur_kernel, X=X, Y=Y, Z=Z, taps=taps,
                             pad_rows=pad_rows, pad_lanes=pad_lanes)
    return pl.pallas_call(
        kern,
        out_shape=jax.ShapeDtypeStruct((B, X, YZ), out_dtype),
        grid=(B,),
        in_specs=[
            pl.BlockSpec((3, 1), lambda b: (0, 0)),
            pl.BlockSpec((3, 1), lambda b: (0, 0)),
            pl.BlockSpec((1, X, YZ), lambda b: (b, 0, 0)),
            pl.BlockSpec((1, X, YZ), lambda b: (b, 0, 0)),
        ],
        out_specs=pl.BlockSpec((1, X, YZ), lambda b: (b, 0, 0)),
        scratch_shapes=[
            pltpu.VMEM((X + 2 * pad_rows, YZ), jnp.float32),
            pltpu.VMEM((X, YZ + 2 * pad_lanes), jnp.float32),
        ],
        compiler_params=pltpu.CompilerParams(
            dimension_semantics=("parallel",)),
    )(wG, bG, img, lab)


# ---------------------------------------------------------------------------
# Stage 2: synthesis surrogate + netD softmax + netSeg softmax/argmax + every
#          masked / dice reduction, fused and tiled over the volume.
#          Output per sample: 10 partial sums
#          [fake_num, m3_sum, seg_num, turing_num, i1, p1, g1, i2, p2, g2].
# ---------------------------------------------------------------------------
_NSUM = 10


def _loss_reduce_kernel(wd_ref, bd_ref, ws_ref, bs_ref,
                        img_ref, lab_ref, diff_ref, out_ref, *, thresh):
    m = pl.program_id(1)
    img = img_ref[0]                          # (TX, YZ) f32
    lab = lab_ref[0]                          # (TX, YZ) int32
    diff = diff_ref[0].astype(jnp.float32)    # blurred generator difference

    tlab = jnp.where((lab == 3) | (lab == 5), 1, lab)
    tlab = jnp.where((lab == 4) | (lab == 6), 2, tlab)

    # Synthesis surrogate (deterministic stand-in for SynthesisTumor)
    fake_image = img + diff
    fake_label = jnp.where(diff > thresh, 3, tlab)
    m3 = (fake_label == 3).astype(jnp.float32)          # fake-tumor mask
    s_m3 = jnp.sum(m3)                                   # shared denominator

    # netD stand-in (1x1x1, Cin=1) + softmax; channel 1 = real_tumor_logit
    wd = wd_ref[...]
    bd = bd_ref[...]
    d = [wd[j:j + 1, 0:1] * fake_image + bd[j:j + 1, 0:1] for j in range(3)]
    dmx = jnp.maximum(jnp.maximum(d[0], d[1]), d[2])
    ed = [jnp.exp(dj - dmx) for dj in d]
    inv_d = pl.reciprocal(ed[0] + ed[1] + ed[2], approx=True)
    s_fake = jnp.sum((ed[1] * inv_d) * m3)

    # netSeg stand-in (1x1x1, Cin=1) + softmax; tumor logit = ch 2 + 4 + 6
    ws = ws_ref[...]
    bs = bs_ref[...]
    sg = [ws[j:j + 1, 0:1] * fake_image + bs[j:j + 1, 0:1] for j in range(7)]
    smx = sg[0]
    for j in range(1, 7):
        smx = jnp.maximum(smx, sg[j])
    es = [jnp.exp(sj - smx) for sj in sg]
    den = es[0]
    for j in range(1, 7):
        den = den + es[j]
    inv_s = pl.reciprocal(den, approx=True)
    s_seg = jnp.sum(((es[2] + es[4] + es[6]) * inv_s) * m3)

    # argmax over the 7 seg channels (first-max tie break), then trans_label
    best = sg[0]
    idx = jnp.zeros_like(lab)
    for j in range(1, 7):
        better = sg[j] > best
        best = jnp.where(better, sg[j], best)
        idx = jnp.where(better, j, idx)
    pred = jnp.where((idx == 3) | (idx == 5), 1, idx)
    pred = jnp.where((idx == 4) | (idx == 6), 2, pred)
    pred_tumor = (pred == 2).astype(jnp.float32)
    s_turing = jnp.sum(m3 * pred_tumor)                  # TuringTest numerator

    # Dice partial sums.  tumor_label = 2 where fake_label >= 2 else 0, so the
    # class-1 ground truth is identically empty: its intersection/gt sums are
    # exact zeros (no extra full-tile sweeps) and its dice is NaN -> dropped by
    # the MONAI-style nan-mean (matching DiceMetric ignore_empty behaviour).
    gt2 = (fake_label >= 2).astype(jnp.float32)
    s_i2 = jnp.sum(pred_tumor * gt2)
    s_p2 = jnp.sum(pred_tumor)
    s_g2 = jnp.sum(gt2)
    s_p1 = jnp.sum((pred == 1).astype(jnp.float32))

    vals = (s_fake, s_m3, s_seg, s_turing, 0.0, s_p1, 0.0, s_i2, s_p2, s_g2)
    lanes = jax.lax.broadcasted_iota(jnp.int32, (1, 1, _NSUM), 2)
    part = jnp.zeros((1, 1, _NSUM), jnp.float32)
    for k, v in enumerate(vals):
        part = jnp.where(lanes == k, v, part)

    @pl.when(m == 0)
    def _():
        out_ref[...] = jnp.zeros_like(out_ref)

    out_ref[...] = out_ref[...] + part


def loss_reductions(img, lab, diff_blur, wD, bD, wS, bS, thresh=0.01):
    B, X, YZ = img.shape
    TX = 8 if X % 8 == 0 else X
    grid = (B, X // TX)
    kern = functools.partial(_loss_reduce_kernel, thresh=thresh)
    return pl.pallas_call(
        kern,
        out_shape=jax.ShapeDtypeStruct((B, 1, _NSUM), jnp.float32),
        grid=grid,
        in_specs=[
            pl.BlockSpec((3, 1), lambda b, m: (0, 0)),
            pl.BlockSpec((3, 1), lambda b, m: (0, 0)),
            pl.BlockSpec((7, 1), lambda b, m: (0, 0)),
            pl.BlockSpec((7, 1), lambda b, m: (0, 0)),
            pl.BlockSpec((1, TX, YZ), lambda b, m: (b, m, 0)),
            pl.BlockSpec((1, TX, YZ), lambda b, m: (b, m, 0)),
            pl.BlockSpec((1, TX, YZ), lambda b, m: (b, m, 0)),
        ],
        out_specs=pl.BlockSpec((1, 1, _NSUM), lambda b, m: (b, 0, 0)),
        compiler_params=pltpu.CompilerParams(
            dimension_semantics=("parallel", "arbitrary")),
    )(wD, bD, wS, bS, img, lab, diff_blur)


# ---------------------------------------------------------------------------
# TGAN forward, mode == 'losses_G'
# ---------------------------------------------------------------------------
def tgan_losses_g(image, label, params):
    B, _, X, Y, Z = image.shape
    YZ = Y * Z
    img = image.reshape(B, X, YZ).astype(jnp.float32)
    lab = label.reshape(B, X, YZ).astype(jnp.int32)

    # Stage 1: difference = trans_diff(tanh(netG(image)), trans_label(label))
    # followed by the per-sample 7x7x7 Gaussian blur, batched over B.
    diff_blur = generator_blur(img, lab, params["wG"], params["bG"], Y, Z)

    # Stage 2: synthesis + netD/netSeg stand-ins + all masked reductions.
    sums = loss_reductions(img, lab, diff_blur,
                           params["wD"], params["bD"], params["wS"], params["bS"])
    s = sums[:, 0, :]                                     # (B, 10)
    m3_sum = jnp.sum(s[:, 1])                             # shared denominator
    fake_loss = 1.0 - jnp.sum(s[:, 0]) / (m3_sum + 1e-6)
    seg_loss = 1.0 - jnp.sum(s[:, 2]) / (m3_sum + 1e-6)

    # dice (MONAI DiceMetric, include_background=False, nan-mean over B x {1,2})
    ipg = s[:, 4:10].reshape(B, 2, 3)
    inter, psum, gsum = ipg[..., 0], ipg[..., 1], ipg[..., 2]
    dice = jnp.where(gsum > 0,
                     2.0 * inter / jnp.maximum(psum + gsum, 1e-12),
                     jnp.nan)
    dice_acc = jnp.nanmean(dice)

    # TuringTest: its selected tensors are discarded in 'losses_G'; only the
    # pass proportion is computed (trans_label_back volume elided, see header).
    _proportion = jnp.sum(s[:, 3]) / (m3_sum + 1e-6)

    return fake_loss, seg_loss, dice_acc


# ---------------------------------------------------------------------------
# main
# ---------------------------------------------------------------------------
if __name__ == "__main__":
    B, X, Y, Z = 2, 16, 16, 16
    key = jax.random.PRNGKey(0)
    k_img, k_lab, kG, kD, kS = jax.random.split(key, 5)

    image = jax.random.normal(k_img, (B, 1, X, Y, Z), jnp.float32)
    label = jax.random.randint(k_lab, (B, 1, X, Y, Z), 0, 7, jnp.int32)

    # Deterministic synthetic weights: netG/netD: 1->3 channels, netSeg: 1->7.
    params = {
        "wG": 0.5 * jax.random.normal(kG, (3, 1), jnp.float32),
        "bG": jnp.zeros((3, 1), jnp.float32),
        "wD": 0.5 * jax.random.normal(kD, (3, 1), jnp.float32),
        "bD": 0.1 * jnp.ones((3, 1), jnp.float32),
        "wS": 0.5 * jax.random.normal(kS, (7, 1), jnp.float32),
        "bS": jnp.zeros((7, 1), jnp.float32),
    }

    fake_loss, seg_loss, dice_acc = jax.jit(tgan_losses_g)(image, label, params)
    jax.block_until_ready((fake_loss, seg_loss, dice_acc))
    print("KERNEL_OK")
</pallas_src>

<mosaic_0001>
module attributes {stable_mosaic.version = 11 : i64} {
  func.func @_gen_blur_kernel(%arg0: i32, %arg1: memref<3x1xf32, #tpu.memory_space<vmem>>, %arg2: memref<3x1xf32, #tpu.memory_space<vmem>>, %arg3: memref<1x16x256xf32, #tpu.memory_space<vmem>>, %arg4: memref<1x16x256xi32, #tpu.memory_space<vmem>>, %arg5: memref<1x16x256xbf16, #tpu.memory_space<vmem>>, %arg6: memref<32x256xf32, #tpu.memory_space<vmem>>, %arg7: memref<16x512xf32, #tpu.memory_space<vmem>>) attributes {dimension_semantics = [#tpu.dimension_semantics<parallel>], iteration_bounds = array<i64: 2>, scalar_prefetch = 0 : i64, scratch_operands = 2 : i64, tpu.core_type = #tpu.core_type<tc>, window_params = [{pipeline_mode = #tpu.pipeline_mode<synchronous>, transform_indices = @transform_0, window_bounds = array<i64: 3, 1>}, {pipeline_mode = #tpu.pipeline_mode<synchronous>, transform_indices = @transform_1, window_bounds = array<i64: 3, 1>}, {transform_indices = @transform_2, window_bounds = array<i64: 1, 16, 256>}, {transform_indices = @transform_3, window_bounds = array<i64: 1, 16, 256>}, {transform_indices = @transform_4, window_bounds = array<i64: 1, 16, 256>}]} {
    %c0 = arith.constant 0 : index
    %c0_0 = arith.constant 0 : index
    %c0_1 = arith.constant 0 : index
    %0 = vector.load %arg3[%c0, %c0_0, %c0_1] : memref<1x16x256xf32, #tpu.memory_space<vmem>>, vector<1x16x256xf32>
    %1 = vector.shape_cast %0 : vector<1x16x256xf32> to vector<16x256xf32>
    %c0_2 = arith.constant 0 : index
    %c0_3 = arith.constant 0 : index
    %c0_4 = arith.constant 0 : index
    %2 = vector.load %arg4[%c0_2, %c0_3, %c0_4] : memref<1x16x256xi32, #tpu.memory_space<vmem>>, vector<1x16x256xi32>
    %3 = vector.shape_cast %2 : vector<1x16x256xi32> to vector<16x256xi32>
    %c3_i32 = arith.constant 3 : i32
    %4 = vector.broadcast %c3_i32 : i32 to vector<16x256xi32>
    %5 = arith.cmpi eq, %3, %4 : vector<16x256xi32>
    %c5_i32 = arith.constant 5 : i32
    %6 = vector.broadcast %c5_i32 : i32 to vector<16x256xi32>
    %7 = arith.cmpi eq, %3, %6 : vector<16x256xi32>
    %8 = arith.ori %5, %7 : vector<16x256xi1>
    %c1_i32 = arith.constant 1 : i32
    %9 = vector.broadcast %c1_i32 : i32 to vector<16x256xi32>
    %10 = arith.select %8, %9, %3 : vector<16x256xi1>, vector<16x256xi32>
    %c4_i32 = arith.constant 4 : i32
    %11 = vector.broadcast %c4_i32 : i32 to vector<16x256xi32>
    %12 = arith.cmpi eq, %3, %11 : vector<16x256xi32>
    %c6_i32 = arith.constant 6 : i32
    %13 = vector.broadcast %c6_i32 : i32 to vector<16x256xi32>
    %14 = arith.cmpi eq, %3, %13 : vector<16x256xi32>
    %15 = arith.ori %12, %14 : vector<16x256xi1>
    %c2_i32 = arith.constant 2 : i32
    %16 = vector.broadcast %c2_i32 : i32 to vector<16x256xi32>
    %17 = arith.select %15, %16, %10 : vector<16x256xi1>, vector<16x256xi32>
    %c0_5 = arith.constant 0 : index
    %c0_6 = arith.constant 0 : index
    %18 = vector.load %arg1[%c0_5, %c0_6] : memref<3x1xf32, #tpu.memory_space<vmem>>, vector<3x1xf32>
    %c0_7 = arith.constant 0 : index
    %c0_8 = arith.constant 0 : index
    %19 = vector.load %arg2[%c0_7, %c0_8] : memref<3x1xf32, #tpu.memory_space<vmem>>, vector<3x1xf32>
    %cst = arith.constant 0.000000e+00 : f32
    %20 = vector.broadcast %cst : f32 to vector<16x256xf32>
    %21 = vector.extract_strided_slice %18 {offsets = [0, 0], sizes = [1, 1], strides = [1, 1]} : vector<3x1xf32> to vector<1x1xf32>
    %22 = vector.broadcast %21 : vector<1x1xf32> to vector<16x256xf32>
    %23 = arith.mulf %22, %1 : vector<16x256xf32>
    %24 = vector.extract_strided_slice %19 {offsets = [0, 0], sizes = [1, 1], strides = [1, 1]} : vector<3x1xf32> to vector<1x1xf32>
    %25 = vector.broadcast %24 : vector<1x1xf32> to vector<16x256xf32>
    %26 = arith.addf %23, %25 : vector<16x256xf32>
    %27 = math.tanh %26 : vector<16x256xf32>
    %c1_i32_9 = arith.constant 1 : i32
    %28 = vector.broadcast %c1_i32_9 : i32 to vector<16x256xi32>
    %29 = arith.cmpi eq, %17, %28 : vector<16x256xi32>
    %30 = arith.extui %29 : vector<16x256xi1> to vector<16x256xi32>
    %31 = arith.sitofp %30 : vector<16x256xi32> to vector<16x256xf32>
    %32 = arith.mulf %27, %31 : vector<16x256xf32>
    %33 = arith.addf %20, %32 : vector<16x256xf32>
    %34 = vector.extract_strided_slice %18 {offsets = [1, 0], sizes = [1, 1], strides = [1, 1]} : vector<3x1xf32> to vector<1x1xf32>
    %35 = vector.broadcast %34 : vector<1x1xf32> to vector<16x256xf32>
    %36 = arith.mulf %35, %1 : vector<16x256xf32>
    %37 = vector.extract_strided_slice %19 {offsets = [1, 0], sizes = [1, 1], strides = [1, 1]} : vector<3x1xf32> to vector<1x1xf32>
    %38 = vector.broadcast %37 : vector<1x1xf32> to vector<16x256xf32>
    %39 = arith.addf %36, %38 : vector<16x256xf32>
    %40 = math.tanh %39 : vector<16x256xf32>
    %c3_i32_10 = arith.constant 3 : i32
    %41 = vector.broadcast %c3_i32_10 : i32 to vector<16x256xi32>
    %42 = arith.cmpi eq, %17, %41 : vector<16x256xi32>
    %43 = arith.extui %42 : vector<16x256xi1> to vector<16x256xi32>
    %44 = arith.sitofp %43 : vector<16x256xi32> to vector<16x256xf32>
    %45 = arith.mulf %40, %44 : vector<16x256xf32>
    %46 = arith.addf %33, %45 : vector<16x256xf32>
    %47 = vector.extract_strided_slice %18 {offsets = [2, 0], sizes = [1, 1], strides = [1, 1]} : vector<3x1xf32> to vector<1x1xf32>
    %48 = vector.broadcast %47 : vector<1x1xf32> to vector<16x256xf32>
    %49 = arith.mulf %48, %1 : vector<16x256xf32>
    %50 = vector.extract_strided_slice %19 {offsets = [2, 0], sizes = [1, 1], strides = [1, 1]} : vector<3x1xf32> to vector<1x1xf32>
    %51 = vector.broadcast %50 : vector<1x1xf32> to vector<16x256xf32>
    %52 = arith.addf %49, %51 : vector<16x256xf32>
    %53 = math.tanh %52 : vector<16x256xf32>
    %c5_i32_11 = arith.constant 5 : i32
    %54 = vector.broadcast %c5_i32_11 : i32 to vector<16x256xi32>
    %55 = arith.cmpi eq, %17, %54 : vector<16x256xi32>
    %56 = arith.extui %55 : vector<16x256xi1> to vector<16x256xi32>
    %57 = arith.sitofp %56 : vector<16x256xi32> to vector<16x256xf32>
    %58 = arith.mulf %53, %57 : vector<16x256xf32>
    %59 = arith.addf %46, %58 : vector<16x256xf32>
    %cst_12 = arith.constant 0.000000e+00 : f32
    %60 = vector.broadcast %cst_12 : f32 to vector<8x256xf32>
    %c0_13 = arith.constant 0 : index
    %c0_14 = arith.constant 0 : index
    %61 = vector.load %arg6[%c0_13, %c0_14] : memref<32x256xf32, #tpu.memory_space<vmem>>, vector<8x256xf32>
    tpu.vector_store %arg6[%c0_13, %c0_14], %60 {strides = array<i32>} : memref<32x256xf32, #tpu.memory_space<vmem>>, vector<8x256xf32>,
    %c24 = arith.constant 24 : index
    %c0_15 = arith.constant 0 : index
    %62 = vector.load %arg6[%c24, %c0_15] : memref<32x256xf32, #tpu.memory_space<vmem>>, vector<8x256xf32>
    tpu.vector_store %arg6[%c24, %c0_15], %60 {strides = array<i32>} : memref<32x256xf32, #tpu.memory_space<vmem>>, vector<8x256xf32>,
    %c8 = arith.constant 8 : index
    %c0_16 = arith.constant 0 : index
    %63 = vector.load %arg6[%c8, %c0_16] : memref<32x256xf32, #tpu.memory_space<vmem>>, vector<16x256xf32>
    tpu.vector_store %arg6[%c8, %c0_16], %59 {strides = array<i32>} : memref<32x256xf32, #tpu.memory_space<vmem>>, vector<16x256xf32>,
    %c5 = arith.constant 5 : index
    %c0_17 = arith.constant 0 : index
    %64 = vector.load %arg6[%c5, %c0_17] : memref<32x256xf32, #tpu.memory_space<vmem>>, vector<16x256xf32>
    %cst_18 = arith.constant 0.00443304796 : f32
    %65 = vector.broadcast %cst_18 : f32 to vector<16x256xf32>
    %66 = arith.mulf %65, %64 : vector<16x256xf32>
    %c6 = arith.constant 6 : index
    %c0_19 = arith.constant 0 : index
    %67 = vector.load %arg6[%c6, %c0_19] : memref<32x256xf32, #tpu.memory_space<vmem>>, vector<16x256xf32>
    %cst_20 = arith.constant 0.0540055819 : f32
    %68 = vector.broadcast %cst_20 : f32 to vector<16x256xf32>
    %69 = arith.mulf %68, %67 : vector<16x256xf32>
    %70 = arith.addf %66, %69 : vector<16x256xf32>
    %c7 = arith.constant 7 : index
    %c0_21 = arith.constant 0 : index
    %71 = vector.load %arg6[%c7, %c0_21] : memref<32x256xf32, #tpu.memory_space<vmem>>, vector<16x256xf32>
    %cst_22 = arith.constant 0.242036223 : f32
    %72 = vector.broadcast %cst_22 : f32 to vector<16x256xf32>
    %73 = arith.mulf %72, %71 : vector<16x256xf32>
    %74 = arith.addf %70, %73 : vector<16x256xf32>
    %c8_23 = arith.constant 8 : index
    %c0_24 = arith.constant 0 : index
    %75 = vector.load %arg6[%c8_23, %c0_24] : memref<32x256xf32, #tpu.memory_space<vmem>>, vector<16x256xf32>
    %cst_25 = arith.constant 0.399050266 : f32
    %76 = vector.broadcast %cst_25 : f32 to vector<16x256xf32>
    %77 = arith.mulf %76, %75 : vector<16x256xf32>
    %78 = arith.addf %74, %77 : vector<16x256xf32>
    %c9 = arith.constant 9 : index
    %c0_26 = arith.constant 0 : index
    %79 = vector.load %arg6[%c9, %c0_26] : memref<32x256xf32, #tpu.memory_space<vmem>>, vector<16x256xf32>
    %cst_27 = arith.constant 0.242036223 : f32
    %80 = vector.broadcast %cst_27 : f32 to vector<16x256xf32>
    %81 = arith.mulf %80, %79 : vector<16x256xf32>
    %82 = arith.addf %78, %81 : vector<16x256xf32>
    %c10 = arith.constant 10 : index
    %c0_28 = arith.constant 0 : index
    %83 = vector.load %arg6[%c10, %c0_28] : memref<32x256xf32, #tpu.memory_space<vmem>>, vector<16x256xf32>
    %cst_29 = arith.constant 0.0540055819 : f32
    %84 = vector.broadcast %cst_29 : f32 to vector<16x256xf32>
    %85 = arith.mulf %84, %83 : vector<16x256xf32>
    %86 = arith.addf %82, %85 : vector<16x256xf32>
    %c11 = arith.constant 11 : index
    %c0_30 = arith.constant 0 : index
    %87 = vector.load %arg6[%c11, %c0_30] : memref<32x256xf32, #tpu.memory_space<vmem>>, vector<16x256xf32>
    %cst_31 = arith.constant 0.00443304796 : f32
    %88 = vector.broadcast %cst_31 : f32 to vector<16x256xf32>
    %89 = arith.mulf %88, %87 : vector<16x256xf32>
    %90 = arith.addf %86, %89 : vector<16x256xf32>
    %cst_32 = arith.constant 0.000000e+00 : f32
    %91 = vector.broadcast %cst_32 : f32 to vector<16x128xf32>
    %c0_33 = arith.constant 0 : index
    %c0_34 = arith.constant 0 : index
    %92 = vector.load %arg7[%c0_33, %c0_34] : memref<16x512xf32, #tpu.memory_space<vmem>>, vector<16x128xf32>
    tpu.vector_store %arg7[%c0_33, %c0_34], %91 {strides = array<i32>} : memref<16x512xf32, #tpu.memory_space<vmem>>, vector<16x128xf32>,
    %c0_35 = arith.constant 0 : index
    %c384 = arith.constant 384 : index
    %93 = vector.load %arg7[%c0_35, %c384] : memref<16x512xf32, #tpu.memory_space<vmem>>, vector<16x128xf32>
    tpu.vector_store %arg7[%c0_35, %c384], %91 {strides = array<i32>} : memref<16x512xf32, #tpu.memory_space<vmem>>, vector<16x128xf32>,
    %c0_36 = arith.constant 0 : index
    %c128 = arith.constant 128 : index
    %94 = vector.load %arg7[%c0_36, %c128] : memref<16x512xf32, #tpu.memory_space<vmem>>, vector<16x256xf32>
    tpu.vector_store %arg7[%c0_36, %c128], %90 {strides = array<i32>} : memref<16x512xf32, #tpu.memory_space<vmem>>, vector<16x256xf32>,
    %c0_37 = arith.constant 0 : index
    %c80 = arith.constant 80 : index
    %95 = vector.load %arg7[%c0_37, %c80] : memref<16x512xf32, #tpu.memory_space<vmem>>, vector<16x256xf32>
    %cst_38 = arith.constant 0.00443304796 : f32
    %96 = vector.broadcast %cst_38 : f32 to vector<16x256xf32>
    %97 = arith.mulf %96, %95 : vector<16x256xf32>
    %c0_39 = arith.constant 0 : index
    %c96 = arith.constant 96 : index
    %98 = vector.load %arg7[%c0_39, %c96] : memref<16x512xf32, #tpu.memory_space<vmem>>, vector<16x256xf32>
    %cst_40 = arith.constant 0.0540055819 : f32
    %99 = vector.broadcast %cst_40 : f32 to vector<16x256xf32>
    %100 = arith.mulf %99, %98 : vector<16x256xf32>
    %101 = arith.addf %97, %100 : vector<16x256xf32>
    %c0_41 = arith.constant 0 : index
    %c112 = arith.constant 112 : index
    %102 = vector.load %arg7[%c0_41, %c112] : memref<16x512xf32, #tpu.memory_space<vmem>>, vector<16x256xf32>
    %cst_42 = arith.constant 0.242036223 : f32
    %103 = vector.broadcast %cst_42 : f32 to vector<16x256xf32>
    %104 = arith.mulf %103, %102 : vector<16x256xf32>
    %105 = arith.addf %101, %104 : vector<16x256xf32>
    %c0_43 = arith.constant 0 : index
    %c128_44 = arith.constant 128 : index
    %106 = vector.load %arg7[%c0_43, %c128_44] : memref<16x512xf32, #tpu.memory_space<vmem>>, vector<16x256xf32>
    %cst_45 = arith.constant 0.399050266 : f32
    %107 = vector.broadcast %cst_45 : f32 to vector<16x256xf32>
    %108 = arith.mulf %107, %106 : vector<16x256xf32>
    %109 = arith.addf %105, %108 : vector<16x256xf32>
    %c0_46 = arith.constant 0 : index
    %c144 = arith.constant 144 : index
    %110 = vector.load %arg7[%c0_46, %c144] : memref<16x512xf32, #tpu.memory_space<vmem>>, vector<16x256xf32>
    %cst_47 = arith.constant 0.242036223 : f32
    %111 = vector.broadcast %cst_47 : f32 to vector<16x256xf32>
    %112 = arith.mulf %111, %110 : vector<16x256xf32>
    %113 = arith.addf %109, %112 : vector<16x256xf32>
    %c0_48 = arith.constant 0 : index
    %c160 = arith.constant 160 : index
    %114 = vector.load %arg7[%c0_48, %c160] : memref<16x512xf32, #tpu.memory_space<vmem>>, vector<16x256xf32>
    %cst_49 = arith.constant 0.0540055819 : f32
    %115 = vector.broadcast %cst_49 : f32 to vector<16x256xf32>
    %116 = arith.mulf %115, %114 : vector<16x256xf32>
    %117 = arith.addf %113, %116 : vector<16x256xf32>
    %c0_50 = arith.constant 0 : index
    %c176 = arith.constant 176 : index
    %118 = vector.load %arg7[%c0_50, %c176] : memref<16x512xf32, #tpu.memory_space<vmem>>, vector<16x256xf32>
    %cst_51 = arith.constant 0.00443304796 : f32
    %119 = vector.broadcast %cst_51 : f32 to vector<16x256xf32>
    %120 = arith.mulf %119, %118 : vector<16x256xf32>
    %121 = arith.addf %117, %120 : vector<16x256xf32>
    %c0_52 = arith.constant 0 : index
    %c128_53 = arith.constant 128 : index
    %122 = vector.load %arg7[%c0_52, %c128_53] : memref<16x512xf32, #tpu.memory_space<vmem>>, vector<16x256xf32>
    tpu.vector_store %arg7[%c0_52, %c128_53], %121 {strides = array<i32>} : memref<16x512xf32, #tpu.memory_space<vmem>>, vector<16x256xf32>,
    %123 = tpu.iota {dimensions = array<i32: 1>} : vector<16x256xi32>
    %c16_i32 = arith.constant 16 : i32
    %c0_i32 = arith.constant 0 : i32
    %124 = arith.cmpi eq, %c16_i32, %c0_i32 : i32
    %c1_i32_54 = arith.constant 1 : i32
    %125 = arith.select %124, %c1_i32_54, %c16_i32 : i32
    %126 = vector.broadcast %125 : i32 to vector<16x256xi32>
    %127 = arith.remsi %123, %126 : vector<16x256xi32>
    %c0_i32_55 = arith.constant 0 : i32
    %128 = vector.broadcast %c0_i32_55 : i32 to vector<16x256xi32>
    %129 = arith.cmpi ne, %127, %128 : vector<16x256xi32>
    %c0_i32_56 = arith.constant 0 : i32
    %130 = vector.broadcast %c0_i32_56 : i32 to vector<16x256xi32>
    %131 = arith.cmpi slt, %127, %130 : vector<16x256xi32>
    %c0_i32_57 = arith.constant 0 : i32
    %132 = arith.cmpi slt, %125, %c0_i32_57 : i32
    %133 = vector.broadcast %132 : i1 to vector<16x256xi1>
    %134 = vector.broadcast %133 : vector<16x256xi1> to vector<16x256xi1>
    %135 = arith.xori %131, %134 : vector<16x256xi1>
    %136 = arith.andi %135, %129 : vector<16x256xi1>
    %137 = vector.broadcast %125 : i32 to vector<16x256xi32>
    %138 = arith.addi %127, %137 : vector<16x256xi32>
    %139 = arith.select %136, %138, %127 : vector<16x256xi1>, vector<16x256xi32>
    %cst_58 = arith.constant 0.399050266 : f32
    %140 = vector.broadcast %cst_58 : f32 to vector<16x256xf32>
    %141 = arith.mulf %140, %121 : vector<16x256xf32>
    %c0_59 = arith.constant 0 : index
    %c125 = arith.constant 125 : index
    %142 = vector.load %arg7[%c0_59, %c125] : memref<16x512xf32, #tpu.memory_space<vmem>>, vector<16x256xf32>
    %c3_i32_60 = arith.constant 3 : i32
    %143 = vector.broadcast %c3_i32_60 : i32 to vector<16x256xi32>
    %144 = arith.cmpi sge, %139, %143 : vector<16x256xi32>
    %cst_61 = arith.constant 0.000000e+00 : f32
    %145 = vector.broadcast %cst_61 : f32 to vector<16x256xf32>
    %146 = arith.select %144, %142, %145 : vector<16x256xi1>, vector<16x256xf32>
    %cst_62 = arith.constant 0.00443304796 : f32
    %147 = vector.broadcast %cst_62 : f32 to vector<16x256xf32>
    %148 = arith.mulf %147, %146 : vector<16x256xf32>
    %149 = arith.addf %141, %148 : vector<16x256xf32>
    %c0_63 = arith.constant 0 : index
    %c126 = arith.constant 126 : index
    %150 = vector.load %arg7[%c0_63, %c126] : memref<16x512xf32, #tpu.memory_space<vmem>>, vector<16x256xf32>
    %c2_i32_64 = arith.constant 2 : i32
    %151 = vector.broadcast %c2_i32_64 : i32 to vector<16x256xi32>
    %152 = arith.cmpi sge, %139, %151 : vector<16x256xi32>
    %cst_65 = arith.constant 0.000000e+00 : f32
    %153 = vector.broadcast %cst_65 : f32 to vector<16x256xf32>
    %154 = arith.select %152, %150, %153 : vector<16x256xi1>, vector<16x256xf32>
    %cst_66 = arith.constant 0.0540055819 : f32
    %155 = vector.broadcast %cst_66 : f32 to vector<16x256xf32>
    %156 = arith.mulf %155, %154 : vector<16x256xf32>
    %157 = arith.addf %149, %156 : vector<16x256xf32>
    %c0_67 = arith.constant 0 : index
    %c127 = arith.constant 127 : index
    %158 = vector.load %arg7[%c0_67, %c127] : memref<16x512xf32, #tpu.memory_space<vmem>>, vector<16x256xf32>
    %c1_i32_68 = arith.constant 1 : i32
    %159 = vector.broadcast %c1_i32_68 : i32 to vector<16x256xi32>
    %160 = arith.cmpi sge, %139, %159 : vector<16x256xi32>
    %cst_69 = arith.constant 0.000000e+00 : f32
    %161 = vector.broadcast %cst_69 : f32 to vector<16x256xf32>
    %162 = arith.select %160, %158, %161 : vector<16x256xi1>, vector<16x256xf32>
    %cst_70 = arith.constant 0.242036223 : f32
    %163 = vector.broadcast %cst_70 : f32 to vector<16x256xf32>
    %164 = arith.mulf %163, %162 : vector<16x256xf32>
    %165 = arith.addf %157, %164 : vector<16x256xf32>
    %c0_71 = arith.constant 0 : index
    %c129 = arith.constant 129 : index
    %166 = vector.load %arg7[%c0_71, %c129] : memref<16x512xf32, #tpu.memory_space<vmem>>, vector<16x256xf32>
    %c15_i32 = arith.constant 15 : i32
    %167 = vector.broadcast %c15_i32 : i32 to vector<16x256xi32>
    %168 = arith.cmpi slt, %139, %167 : vector<16x256xi32>
    %cst_72 = arith.constant 0.000000e+00 : f32
    %169 = vector.broadcast %cst_72 : f32 to vector<16x256xf32>
    %170 = arith.select %168, %166, %169 : vector<16x256xi1>, vector<16x256xf32>
    %cst_73 = arith.constant 0.242036223 : f32
    %171 = vector.broadcast %cst_73 : f32 to vector<16x256xf32>
    %172 = arith.mulf %171, %170 : vector<16x256xf32>
    %173 = arith.addf %165, %172 : vector<16x256xf32>
    %c0_74 = arith.constant 0 : index
    %c130 = arith.constant 130 : index
    %174 = vector.load %arg7[%c0_74, %c130] : memref<16x512xf32, #tpu.memory_space<vmem>>, vector<16x256xf32>
    %c14_i32 = arith.constant 14 : i32
    %175 = vector.broadcast %c14_i32 : i32 to vector<16x256xi32>
    %176 = arith.cmpi slt, %139, %175 : vector<16x256xi32>
    %cst_75 = arith.constant 0.000000e+00 : f32
    %177 = vector.broadcast %cst_75 : f32 to vector<16x256xf32>
    %178 = arith.select %176, %174, %177 : vector<16x256xi1>, vector<16x256xf32>
    %cst_76 = arith.constant 0.0540055819 : f32
    %179 = vector.broadcast %cst_76 : f32 to vector<16x256xf32>
    %180 = arith.mulf %179, %178 : vector<16x256xf32>
    %181 = arith.addf %173, %180 : vector<16x256xf32>
    %c0_77 = arith.constant 0 : index
    %c131 = arith.constant 131 : index
    %182 = vector.load %arg7[%c0_77, %c131] : memref<16x512xf32, #tpu.memory_space<vmem>>, vector<16x256xf32>
    %c13_i32 = arith.constant 13 : i32
    %183 = vector.broadcast %c13_i32 : i32 to vector<16x256xi32>
    %184 = arith.cmpi slt, %139, %183 : vector<16x256xi32>
    %cst_78 = arith.constant 0.000000e+00 : f32
    %185 = vector.broadcast %cst_78 : f32 to vector<16x256xf32>
    %186 = arith.select %184, %182, %185 : vector<16x256xi1>, vector<16x256xf32>
    %cst_79 = arith.constant 0.00443304796 : f32
    %187 = vector.broadcast %cst_79 : f32 to vector<16x256xf32>
    %188 = arith.mulf %187, %186 : vector<16x256xf32>
    %189 = arith.addf %181, %188 : vector<16x256xf32>
    %190 = arith.truncf %189 : vector<16x256xf32> to vector<16x256xbf16>
    %c0_80 = arith.constant 0 : index
    %c0_81 = arith.constant 0 : index
    %c0_82 = arith.constant 0 : index
    %191 = vector.load %arg5[%c0_80, %c0_81, %c0_82] : memref<1x16x256xbf16, #tpu.memory_space<vmem>>, vector<1x16x256xbf16>
    %192 = vector.shape_cast %191 : vector<1x16x256xbf16> to vector<16x256xbf16>
    %193 = vector.shape_cast %190 : vector<16x256xbf16> to vector<1x16x256xbf16>
    tpu.vector_store %arg5[%c0_80, %c0_81, %c0_82], %193 {strides = array<i32>} : memref<1x16x256xbf16, #tpu.memory_space<vmem>>, vector<1x16x256xbf16>,
    return
  }
  func.func @transform_0(%arg0: i32) -> (i32, i32) {
    %c0_i32 = arith.constant 0 : i32
    %c0_i32_0 = arith.constant 0 : i32
    %c0_i32_1 = arith.constant 0 : i32
    return %c0_i32, %c0_i32_0 : i32, i32
  }
  func.func @transform_1(%arg0: i32) -> (i32, i32) {
    %c0_i32 = arith.constant 0 : i32
    %c0_i32_0 = arith.constant 0 : i32
    %c0_i32_1 = arith.constant 0 : i32
    return %c0_i32, %c0_i32_0 : i32, i32
  }
  func.func @transform_2(%arg0: i32) -> (i32, i32, i32) {
    %c0_i32 = arith.constant 0 : i32
    %c0_i32_0 = arith.constant 0 : i32
    %c0_i32_1 = arith.constant 0 : i32
    return %arg0, %c0_i32, %c0_i32_0 : i32, i32, i32
  }
  func.func @transform_3(%arg0: i32) -> (i32, i32, i32) {
    %c0_i32 = arith.constant 0 : i32
    %c0_i32_0 = arith.constant 0 : i32
    %c0_i32_1 = arith.constant 0 : i32
    return %arg0, %c0_i32, %c0_i32_0 : i32, i32, i32
  }
  func.func @transform_4(%arg0: i32) -> (i32, i32, i32) {
    %c0_i32 = arith.constant 0 : i32
    %c0_i32_0 = arith.constant 0 : i32
    %c0_i32_1 = arith.constant 0 : i32
    return %arg0, %c0_i32, %c0_i32_0 : i32, i32, i32
  }
}

module attributes {stable_mosaic.version = 11 : i64} {
  func.func @_loss_reduce_kernel(%arg0: i32, %arg1: i32, %arg2: memref<3x1xf32, #tpu.memory_space<vmem>>, %arg3: memref<3x1xf32, #tpu.memory_space<vmem>>, %arg4: memref<7x1xf32, #tpu.memory_space<vmem>>, %arg5: memref<7x1xf32, #tpu.memory_space<vmem>>, %arg6: memref<1x8x256xf32, #tpu.memory_space<vmem>>, %arg7: memref<1x8x256xi32, #tpu.memory_space<vmem>>, %arg8: memref<1x8x256xbf16, #tpu.memory_space<vmem>>, %arg9: memref<1x1x10xf32, #tpu.memory_space<vmem>>) attributes {dimension_semantics = [#tpu.dimension_semantics<parallel>, #tpu.dimension_semantics<arbitrary>], iteration_bounds = array<i64: 2, 2>, scalar_prefetch = 0 : i64, scratch_operands = 0 : i64, tpu.core_type = #tpu.core_type<tc>, window_params = [{pipeline_mode = #tpu.pipeline_mode<synchronous>, transform_indices = @transform_0, window_bounds = array<i64: 3, 1>}, {pipeline_mode = #tpu.pipeline_mode<synchronous>, transform_indices = @transform_1, window_bounds = array<i64: 3, 1>}, {pipeline_mode = #tpu.pipeline_mode<synchronous>, transform_indices = @transform_2, window_bounds = array<i64: 7, 1>}, {pipeline_mode = #tpu.pipeline_mode<synchronous>, transform_indices = @transform_3, window_bounds = array<i64: 7, 1>}, {transform_indices = @transform_4, window_bounds = array<i64: 1, 8, 256>}, {transform_indices = @transform_5, window_bounds = array<i64: 1, 8, 256>}, {transform_indices = @transform_6, window_bounds = array<i64: 1, 8, 256>}, {transform_indices = @transform_7, window_bounds = array<i64: 1, 1, 10>}]} {
    %c0 = arith.constant 0 : index
    %c0_0 = arith.constant 0 : index
    %c0_1 = arith.constant 0 : index
    %0 = vector.load %arg6[%c0, %c0_0, %c0_1] : memref<1x8x256xf32, #tpu.memory_space<vmem>>, vector<1x8x256xf32>
    %1 = vector.shape_cast %0 : vector<1x8x256xf32> to vector<8x256xf32>
    %c0_2 = arith.constant 0 : index
    %c0_3 = arith.constant 0 : index
    %c0_4 = arith.constant 0 : index
    %2 = vector.load %arg7[%c0_2, %c0_3, %c0_4] : memref<1x8x256xi32, #tpu.memory_space<vmem>>, vector<1x8x256xi32>
    %3 = vector.shape_cast %2 : vector<1x8x256xi32> to vector<8x256xi32>
    %c0_5 = arith.constant 0 : index
    %c0_6 = arith.constant 0 : index
    %c0_7 = arith.constant 0 : index
    %4 = vector.load %arg8[%c0_5, %c0_6, %c0_7] : memref<1x8x256xbf16, #tpu.memory_space<vmem>>, vector<1x8x256xbf16>
    %5 = vector.shape_cast %4 : vector<1x8x256xbf16> to vector<8x256xbf16>
    %6 = arith.extf %5 : vector<8x256xbf16> to vector<8x256xf32>
    %c3_i32 = arith.constant 3 : i32
    %7 = vector.broadcast %c3_i32 : i32 to vector<8x256xi32>
    %8 = arith.cmpi eq, %3, %7 : vector<8x256xi32>
    %c5_i32 = arith.constant 5 : i32
    %9 = vector.broadcast %c5_i32 : i32 to vector<8x256xi32>
    %10 = arith.cmpi eq, %3, %9 : vector<8x256xi32>
    %11 = arith.ori %8, %10 : vector<8x256xi1>
    %c1_i32 = arith.constant 1 : i32
    %12 = vector.broadcast %c1_i32 : i32 to vector<8x256xi32>
    %13 = arith.select %11, %12, %3 : vector<8x256xi1>, vector<8x256xi32>
    %c4_i32 = arith.constant 4 : i32
    %14 = vector.broadcast %c4_i32 : i32 to vector<8x256xi32>
    %15 = arith.cmpi eq, %3, %14 : vector<8x256xi32>
    %c6_i32 = arith.constant 6 : i32
    %16 = vector.broadcast %c6_i32 : i32 to vector<8x256xi32>
    %17 = arith.cmpi eq, %3, %16 : vector<8x256xi32>
    %18 = arith.ori %15, %17 : vector<8x256xi1>
    %c2_i32 = arith.constant 2 : i32
    %19 = vector.broadcast %c2_i32 : i32 to vector<8x256xi32>
    %20 = arith.select %18, %19, %13 : vector<8x256xi1>, vector<8x256xi32>
    %21 = arith.addf %1, %6 : vector<8x256xf32>
    %cst = arith.constant 0.00999999977 : f32
    %22 = vector.broadcast %cst : f32 to vector<8x256xf32>
    %23 = arith.cmpf ogt, %6, %22 : vector<8x256xf32>
    %c3_i32_8 = arith.constant 3 : i32
    %24 = vector.broadcast %c3_i32_8 : i32 to vector<8x256xi32>
    %25 = arith.select %23, %24, %20 : vector<8x256xi1>, vector<8x256xi32>
    %c3_i32_9 = arith.constant 3 : i32
    %26 = vector.broadcast %c3_i32_9 : i32 to vector<8x256xi32>
    %27 = arith.cmpi eq, %25, %26 : vector<8x256xi32>
    %28 = arith.extui %27 : vector<8x256xi1> to vector<8x256xi32>
    %29 = arith.sitofp %28 : vector<8x256xi32> to vector<8x256xf32>
    %30 = vector.shape_cast %29 : vector<8x256xf32> to vector<1x8x256xf32>
    %cst_10 = arith.constant dense<0.000000e+00> : vector<1xf32>
    %31 = vector.multi_reduction <add>, %30, %cst_10 [1, 2] : vector<1x8x256xf32> to vector<1xf32>
    %32 = vector.shape_cast %31 : vector<1xf32> to vector<1x1x1xf32>
    %33 = vector.extract %32[0, 0, 0] : f32 from vector<1x1x1xf32>
    %c0_11 = arith.constant 0 : index
    %c0_12 = arith.constant 0 : index
    %34 = vector.load %arg2[%c0_11, %c0_12] : memref<3x1xf32, #tpu.memory_space<vmem>>, vector<3x1xf32>
    %c0_13 = arith.constant 0 : index
    %c0_14 = arith.constant 0 : index
    %35 = vector.load %arg3[%c0_13, %c0_14] : memref<3x1xf32, #tpu.memory_space<vmem>>, vector<3x1xf32>
    %36 = vector.extract_strided_slice %34 {offsets = [0, 0], sizes = [1, 1], strides = [1, 1]} : vector<3x1xf32> to vector<1x1xf32>
    %37 = vector.broadcast %36 : vector<1x1xf32> to vector<8x256xf32>
    %38 = arith.mulf %37, %21 : vector<8x256xf32>
    %39 = vector.extract_strided_slice %35 {offsets = [0, 0], sizes = [1, 1], strides = [1, 1]} : vector<3x1xf32> to vector<1x1xf32>
    %40 = vector.broadcast %39 : vector<1x1xf32> to vector<8x256xf32>
    %41 = arith.addf %38, %40 : vector<8x256xf32>
    %42 = vector.extract_strided_slice %34 {offsets = [1, 0], sizes = [1, 1], strides = [1, 1]} : vector<3x1xf32> to vector<1x1xf32>
    %43 = vector.broadcast %42 : vector<1x1xf32> to vector<8x256xf32>
    %44 = arith.mulf %43, %21 : vector<8x256xf32>
    %45 = vector.extract_strided_slice %35 {offsets = [1, 0], sizes = [1, 1], strides = [1, 1]} : vector<3x1xf32> to vector<1x1xf32>
    %46 = vector.broadcast %45 : vector<1x1xf32> to vector<8x256xf32>
    %47 = arith.addf %44, %46 : vector<8x256xf32>
    %48 = vector.extract_strided_slice %34 {offsets = [2, 0], sizes = [1, 1], strides = [1, 1]} : vector<3x1xf32> to vector<1x1xf32>
    %49 = vector.broadcast %48 : vector<1x1xf32> to vector<8x256xf32>
    %50 = arith.mulf %49, %21 : vector<8x256xf32>
    %51 = vector.extract_strided_slice %35 {offsets = [2, 0], sizes = [1, 1], strides = [1, 1]} : vector<3x1xf32> to vector<1x1xf32>
    %52 = vector.broadcast %51 : vector<1x1xf32> to vector<8x256xf32>
    %53 = arith.addf %50, %52 : vector<8x256xf32>
    %54 = arith.maximumf %41, %47 : vector<8x256xf32>
    %55 = arith.maximumf %54, %53 : vector<8x256xf32>
    %56 = arith.subf %41, %55 : vector<8x256xf32>
    %57 = math.exp %56 : vector<8x256xf32>
    %58 = arith.subf %47, %55 : vector<8x256xf32>
    %59 = math.exp %58 : vector<8x256xf32>
    %60 = arith.subf %53, %55 : vector<8x256xf32>
    %61 = math.exp %60 : vector<8x256xf32>
    %62 = arith.addf %57, %59 : vector<8x256xf32>
    %63 = arith.addf %62, %61 : vector<8x256xf32>
    %64 = tpu.reciprocal %63 {approx = true} : vector<8x256xf32> -> vector<8x256xf32>
    %65 = arith.mulf %59, %64 : vector<8x256xf32>
    %66 = arith.mulf %65, %29 : vector<8x256xf32>
    %67 = vector.shape_cast %66 : vector<8x256xf32> to vector<1x8x256xf32>
    %cst_15 = arith.constant dense<0.000000e+00> : vector<1xf32>
    %68 = vector.multi_reduction <add>, %67, %cst_15 [1, 2] : vector<1x8x256xf32> to vector<1xf32>
    %69 = vector.shape_cast %68 : vector<1xf32> to vector<1x1x1xf32>
    %70 = vector.extract %69[0, 0, 0] : f32 from vector<1x1x1xf32>
    %c0_16 = arith.constant 0 : index
    %c0_17 = arith.constant 0 : index
    %71 = vector.load %arg4[%c0_16, %c0_17] : memref<7x1xf32, #tpu.memory_space<vmem>>, vector<7x1xf32>
    %c0_18 = arith.constant 0 : index
    %c0_19 = arith.constant 0 : index
    %72 = vector.load %arg5[%c0_18, %c0_19] : memref<7x1xf32, #tpu.memory_space<vmem>>, vector<7x1xf32>
    %73 = vector.extract_strided_slice %71 {offsets = [0, 0], sizes = [1, 1], strides = [1, 1]} : vector<7x1xf32> to vector<1x1xf32>
    %74 = vector.broadcast %73 : vector<1x1xf32> to vector<8x256xf32>
    %75 = arith.mulf %74, %21 : vector<8x256xf32>
    %76 = vector.extract_strided_slice %72 {offsets = [0, 0], sizes = [1, 1], strides = [1, 1]} : vector<7x1xf32> to vector<1x1xf32>
    %77 = vector.broadcast %76 : vector<1x1xf32> to vector<8x256xf32>
    %78 = arith.addf %75, %77 : vector<8x256xf32>
    %79 = vector.extract_strided_slice %71 {offsets = [1, 0], sizes = [1, 1], strides = [1, 1]} : vector<7x1xf32> to vector<1x1xf32>
    %80 = vector.broadcast %79 : vector<1x1xf32> to vector<8x256xf32>
    %81 = arith.mulf %80, %21 : vector<8x256xf32>
    %82 = vector.extract_strided_slice %72 {offsets = [1, 0], sizes = [1, 1], strides = [1, 1]} : vector<7x1xf32> to vector<1x1xf32>
    %83 = vector.broadcast %82 : vector<1x1xf32> to vector<8x256xf32>
    %84 = arith.addf %81, %83 : vector<8x256xf32>
    %85 = vector.extract_strided_slice %71 {offsets = [2, 0], sizes = [1, 1], strides = [1, 1]} : vector<7x1xf32> to vector<1x1xf32>
    %86 = vector.broadcast %85 : vector<1x1xf32> to vector<8x256xf32>
    %87 = arith.mulf %86, %21 : vector<8x256xf32>
    %88 = vector.extract_strided_slice %72 {offsets = [2, 0], sizes = [1, 1], strides = [1, 1]} : vector<7x1xf32> to vector<1x1xf32>
    %89 = vector.broadcast %88 : vector<1x1xf32> to vector<8x256xf32>
    %90 = arith.addf %87, %89 : vector<8x256xf32>
    %91 = vector.extract_strided_slice %71 {offsets = [3, 0], sizes = [1, 1], strides = [1, 1]} : vector<7x1xf32> to vector<1x1xf32>
    %92 = vector.broadcast %91 : vector<1x1xf32> to vector<8x256xf32>
    %93 = arith.mulf %92, %21 : vector<8x256xf32>
    %94 = vector.extract_strided_slice %72 {offsets = [3, 0], sizes = [1, 1], strides = [1, 1]} : vector<7x1xf32> to vector<1x1xf32>
    %95 = vector.broadcast %94 : vector<1x1xf32> to vector<8x256xf32>
    %96 = arith.addf %93, %95 : vector<8x256xf32>
    %97 = vector.extract_strided_slice %71 {offsets = [4, 0], sizes = [1, 1], strides = [1, 1]} : vector<7x1xf32> to vector<1x1xf32>
    %98 = vector.broadcast %97 : vector<1x1xf32> to vector<8x256xf32>
    %99 = arith.mulf %98, %21 : vector<8x256xf32>
    %100 = vector.extract_strided_slice %72 {offsets = [4, 0], sizes = [1, 1], strides = [1, 1]} : vector<7x1xf32> to vector<1x1xf32>
    %101 = vector.broadcast %100 : vector<1x1xf32> to vector<8x256xf32>
    %102 = arith.addf %99, %101 : vector<8x256xf32>
    %103 = vector.extract_strided_slice %71 {offsets = [5, 0], sizes = [1, 1], strides = [1, 1]} : vector<7x1xf32> to vector<1x1xf32>
    %104 = vector.broadcast %103 : vector<1x1xf32> to vector<8x256xf32>
    %105 = arith.mulf %104, %21 : vector<8x256xf32>
    %106 = vector.extract_strided_slice %72 {offsets = [5, 0], sizes = [1, 1], strides = [1, 1]} : vector<7x1xf32> to vector<1x1xf32>
    %107 = vector.broadcast %106 : vector<1x1xf32> to vector<8x256xf32>
    %108 = arith.addf %105, %107 : vector<8x256xf32>
    %109 = vector.extract_strided_slice %71 {offsets = [6, 0], sizes = [1, 1], strides = [1, 1]} : vector<7x1xf32> to vector<1x1xf32>
    %110 = vector.broadcast %109 : vector<1x1xf32> to vector<8x256xf32>
    %111 = arith.mulf %110, %21 : vector<8x256xf32>
    %112 = vector.extract_strided_slice %72 {offsets = [6, 0], sizes = [1, 1], strides = [1, 1]} : vector<7x1xf32> to vector<1x1xf32>
    %113 = vector.broadcast %112 : vector<1x1xf32> to vector<8x256xf32>
    %114 = arith.addf %111, %113 : vector<8x256xf32>
    %115 = arith.maximumf %78, %84 : vector<8x256xf32>
    %116 = arith.maximumf %115, %90 : vector<8x256xf32>
    %117 = arith.maximumf %116, %96 : vector<8x256xf32>
    %118 = arith.maximumf %117, %102 : vector<8x256xf32>
    %119 = arith.maximumf %118, %108 : vector<8x256xf32>
    %120 = arith.maximumf %119, %114 : vector<8x256xf32>
    %121 = arith.subf %78, %120 : vector<8x256xf32>
    %122 = math.exp %121 : vector<8x256xf32>
    %123 = arith.subf %84, %120 : vector<8x256xf32>
    %124 = math.exp %123 : vector<8x256xf32>
    %125 = arith.subf %90, %120 : vector<8x256xf32>
    %126 = math.exp %125 : vector<8x256xf32>
    %127 = arith.subf %96, %120 : vector<8x256xf32>
    %128 = math.exp %127 : vector<8x256xf32>
    %129 = arith.subf %102, %120 : vector<8x256xf32>
    %130 = math.exp %129 : vector<8x256xf32>
    %131 = arith.subf %108, %120 : vector<8x256xf32>
    %132 = math.exp %131 : vector<8x256xf32>
    %133 = arith.subf %114, %120 : vector<8x256xf32>
    %134 = math.exp %133 : vector<8x256xf32>
    %135 = arith.addf %122, %124 : vector<8x256xf32>
    %136 = arith.addf %135, %126 : vector<8x256xf32>
    %137 = arith.addf %136, %128 : vector<8x256xf32>
    %138 = arith.addf %137, %130 : vector<8x256xf32>
    %139 = arith.addf %138, %132 : vector<8x256xf32>
    %140 = arith.addf %139, %134 : vector<8x256xf32>
    %141 = tpu.reciprocal %140 {approx = true} : vector<8x256xf32> -> vector<8x256xf32>
    %142 = arith.addf %126, %130 : vector<8x256xf32>
    %143 = arith.addf %142, %134 : vector<8x256xf32>
    %144 = arith.mulf %143, %141 : vector<8x256xf32>
    %145 = arith.mulf %144, %29 : vector<8x256xf32>
    %146 = vector.shape_cast %145 : vector<8x256xf32> to vector<1x8x256xf32>
    %cst_20 = arith.constant dense<0.000000e+00> : vector<1xf32>
    %147 = vector.multi_reduction <add>, %146, %cst_20 [1, 2] : vector<1x8x256xf32> to vector<1xf32>
    %148 = vector.shape_cast %147 : vector<1xf32> to vector<1x1x1xf32>
    %149 = vector.extract %148[0, 0, 0] : f32 from vector<1x1x1xf32>
    %c0_i32 = arith.constant 0 : i32
    %150 = vector.broadcast %c0_i32 : i32 to vector<8x256xi32>
    %151 = arith.cmpf ogt, %84, %78 : vector<8x256xf32>
    %152 = arith.select %151, %84, %78 : vector<8x256xi1>, vector<8x256xf32>
    %c1_i32_21 = arith.constant 1 : i32
    %153 = vector.broadcast %c1_i32_21 : i32 to vector<8x256xi32>
    %154 = arith.select %151, %153, %150 : vector<8x256xi1>, vector<8x256xi32>
    %155 = arith.cmpf ogt, %90, %152 : vector<8x256xf32>
    %156 = arith.select %155, %90, %152 : vector<8x256xi1>, vector<8x256xf32>
    %c2_i32_22 = arith.constant 2 : i32
    %157 = vector.broadcast %c2_i32_22 : i32 to vector<8x256xi32>
    %158 = arith.select %155, %157, %154 : vector<8x256xi1>, vector<8x256xi32>
    %159 = arith.cmpf ogt, %96, %156 : vector<8x256xf32>
    %160 = arith.select %159, %96, %156 : vector<8x256xi1>, vector<8x256xf32>
    %c3_i32_23 = arith.constant 3 : i32
    %161 = vector.broadcast %c3_i32_23 : i32 to vector<8x256xi32>
    %162 = arith.select %159, %161, %158 : vector<8x256xi1>, vector<8x256xi32>
    %163 = arith.cmpf ogt, %102, %160 : vector<8x256xf32>
    %164 = arith.select %163, %102, %160 : vector<8x256xi1>, vector<8x256xf32>
    %c4_i32_24 = arith.constant 4 : i32
    %165 = vector.broadcast %c4_i32_24 : i32 to vector<8x256xi32>
    %166 = arith.select %163, %165, %162 : vector<8x256xi1>, vector<8x256xi32>
    %167 = arith.cmpf ogt, %108, %164 : vector<8x256xf32>
    %168 = arith.select %167, %108, %164 : vector<8x256xi1>, vector<8x256xf32>
    %c5_i32_25 = arith.constant 5 : i32
    %169 = vector.broadcast %c5_i32_25 : i32 to vector<8x256xi32>
    %170 = arith.select %167, %169, %166 : vector<8x256xi1>, vector<8x256xi32>
    %171 = arith.cmpf ogt, %114, %168 : vector<8x256xf32>
    %c6_i32_26 = arith.constant 6 : i32
    %172 = vector.broadcast %c6_i32_26 : i32 to vector<8x256xi32>
    %173 = arith.select %171, %172, %170 : vector<8x256xi1>, vector<8x256xi32>
    %c3_i32_27 = arith.constant 3 : i32
    %174 = vector.broadcast %c3_i32_27 : i32 to vector<8x256xi32>
    %175 = arith.cmpi eq, %173, %174 : vector<8x256xi32>
    %c5_i32_28 = arith.constant 5 : i32
    %176 = vector.broadcast %c5_i32_28 : i32 to vector<8x256xi32>
    %177 = arith.cmpi eq, %173, %176 : vector<8x256xi32>
    %178 = arith.ori %175, %177 : vector<8x256xi1>
    %c1_i32_29 = arith.constant 1 : i32
    %179 = vector.broadcast %c1_i32_29 : i32 to vector<8x256xi32>
    %180 = arith.select %178, %179, %173 : vector<8x256xi1>, vector<8x256xi32>
    %c4_i32_30 = arith.constant 4 : i32
    %181 = vector.broadcast %c4_i32_30 : i32 to vector<8x256xi32>
    %182 = arith.cmpi eq, %173, %181 : vector<8x256xi32>
    %c6_i32_31 = arith.constant 6 : i32
    %183 = vector.broadcast %c6_i32_31 : i32 to vector<8x256xi32>
    %184 = arith.cmpi eq, %173, %183 : vector<8x256xi32>
    %185 = arith.ori %182, %184 : vector<8x256xi1>
    %c2_i32_32 = arith.constant 2 : i32
    %186 = vector.broadcast %c2_i32_32 : i32 to vector<8x256xi32>
    %187 = arith.select %185, %186, %180 : vector<8x256xi1>, vector<8x256xi32>
    %c2_i32_33 = arith.constant 2 : i32
    %188 = vector.broadcast %c2_i32_33 : i32 to vector<8x256xi32>
    %189 = arith.cmpi eq, %187, %188 : vector<8x256xi32>
    %190 = arith.extui %189 : vector<8x256xi1> to vector<8x256xi32>
    %191 = arith.sitofp %190 : vector<8x256xi32> to vector<8x256xf32>
    %192 = arith.mulf %29, %191 : vector<8x256xf32>
    %193 = vector.shape_cast %192 : vector<8x256xf32> to vector<1x8x256xf32>
    %cst_34 = arith.constant dense<0.000000e+00> : vector<1xf32>
    %194 = vector.multi_reduction <add>, %193, %cst_34 [1, 2] : vector<1x8x256xf32> to vector<1xf32>
    %195 = vector.shape_cast %194 : vector<1xf32> to vector<1x1x1xf32>
    %196 = vector.extract %195[0, 0, 0] : f32 from vector<1x1x1xf32>
    %c2_i32_35 = arith.constant 2 : i32
    %197 = vector.broadcast %c2_i32_35 : i32 to vector<8x256xi32>
    %198 = arith.cmpi sge, %25, %197 : vector<8x256xi32>
    %199 = arith.extui %198 : vector<8x256xi1> to vector<8x256xi32>
    %200 = arith.sitofp %199 : vector<8x256xi32> to vector<8x256xf32>
    %201 = arith.mulf %191, %200 : vector<8x256xf32>
    %202 = vector.shape_cast %201 : vector<8x256xf32> to vector<1x8x256xf32>
    %cst_36 = arith.constant dense<0.000000e+00> : vector<1xf32>
    %203 = vector.multi_reduction <add>, %202, %cst_36 [1, 2] : vector<1x8x256xf32> to vector<1xf32>
    %204 = vector.shape_cast %203 : vector<1xf32> to vector<1x1x1xf32>
    %205 = vector.extract %204[0, 0, 0] : f32 from vector<1x1x1xf32>
    %206 = vector.shape_cast %191 : vector<8x256xf32> to vector<1x8x256xf32>
    %cst_37 = arith.constant dense<0.000000e+00> : vector<1xf32>
    %207 = vector.multi_reduction <add>, %206, %cst_37 [1, 2] : vector<1x8x256xf32> to vector<1xf32>
    %208 = vector.shape_cast %207 : vector<1xf32> to vector<1x1x1xf32>
    %209 = vector.extract %208[0, 0, 0] : f32 from vector<1x1x1xf32>
    %210 = vector.shape_cast %200 : vector<8x256xf32> to vector<1x8x256xf32>
    %cst_38 = arith.constant dense<0.000000e+00> : vector<1xf32>
    %211 = vector.multi_reduction <add>, %210, %cst_38 [1, 2] : vector<1x8x256xf32> to vector<1xf32>
    %212 = vector.shape_cast %211 : vector<1xf32> to vector<1x1x1xf32>
    %213 = vector.extract %212[0, 0, 0] : f32 from vector<1x1x1xf32>
    %c1_i32_39 = arith.constant 1 : i32
    %214 = vector.broadcast %c1_i32_39 : i32 to vector<8x256xi32>
    %215 = arith.cmpi eq, %187, %214 : vector<8x256xi32>
    %216 = arith.extui %215 : vector<8x256xi1> to vector<8x256xi32>
    %217 = arith.sitofp %216 : vector<8x256xi32> to vector<8x256xf32>
    %218 = vector.shape_cast %217 : vector<8x256xf32> to vector<1x8x256xf32>
    %cst_40 = arith.constant dense<0.000000e+00> : vector<1xf32>
    %219 = vector.multi_reduction <add>, %218, %cst_40 [1, 2] : vector<1x8x256xf32> to vector<1xf32>
    %220 = vector.shape_cast %219 : vector<1xf32> to vector<1x1x1xf32>
    %221 = vector.extract %220[0, 0, 0] : f32 from vector<1x1x1xf32>
    %222 = tpu.iota {dimensions = array<i32: 2>} : vector<1x1x10xi32>
    %cst_41 = arith.constant 0.000000e+00 : f32
    %223 = vector.broadcast %cst_41 : f32 to vector<1x1x10xf32>
    %c0_i32_42 = arith.constant 0 : i32
    %224 = vector.broadcast %c0_i32_42 : i32 to vector<1x1x10xi32>
    %225 = arith.cmpi eq, %222, %224 : vector<1x1x10xi32>
    %226 = vector.broadcast %70 : f32 to vector<1x1x10xf32>
    %227 = arith.select %225, %226, %223 : vector<1x1x10xi1>, vector<1x1x10xf32>
    %c1_i32_43 = arith.constant 1 : i32
    %228 = vector.broadcast %c1_i32_43 : i32 to vector<1x1x10xi32>
    %229 = arith.cmpi eq, %222, %228 : vector<1x1x10xi32>
    %230 = vector.broadcast %33 : f32 to vector<1x1x10xf32>
    %231 = arith.select %229, %230, %227 : vector<1x1x10xi1>, vector<1x1x10xf32>
    %c2_i32_44 = arith.constant 2 : i32
    %232 = vector.broadcast %c2_i32_44 : i32 to vector<1x1x10xi32>
    %233 = arith.cmpi eq, %222, %232 : vector<1x1x10xi32>
    %234 = vector.broadcast %149 : f32 to vector<1x1x10xf32>
    %235 = arith.select %233, %234, %231 : vector<1x1x10xi1>, vector<1x1x10xf32>
    %c3_i32_45 = arith.constant 3 : i32
    %236 = vector.broadcast %c3_i32_45 : i32 to vector<1x1x10xi32>
    %237 = arith.cmpi eq, %222, %236 : vector<1x1x10xi32>
    %238 = vector.broadcast %196 : f32 to vector<1x1x10xf32>
    %239 = arith.select %237, %238, %235 : vector<1x1x10xi1>, vector<1x1x10xf32>
    %c4_i32_46 = arith.constant 4 : i32
    %240 = vector.broadcast %c4_i32_46 : i32 to vector<1x1x10xi32>
    %241 = arith.cmpi eq, %222, %240 : vector<1x1x10xi32>
    %cst_47 = arith.constant 0.000000e+00 : f32
    %242 = vector.broadcast %cst_47 : f32 to vector<1x1x10xf32>
    %243 = arith.select %241, %242, %239 : vector<1x1x10xi1>, vector<1x1x10xf32>
    %c5_i32_48 = arith.constant 5 : i32
    %244 = vector.broadcast %c5_i32_48 : i32 to vector<1x1x10xi32>
    %245 = arith.cmpi eq, %222, %244 : vector<1x1x10xi32>
    %246 = vector.broadcast %221 : f32 to vector<1x1x10xf32>
    %247 = arith.select %245, %246, %243 : vector<1x1x10xi1>, vector<1x1x10xf32>
    %c6_i32_49 = arith.constant 6 : i32
    %248 = vector.broadcast %c6_i32_49 : i32 to vector<1x1x10xi32>
    %249 = arith.cmpi eq, %222, %248 : vector<1x1x10xi32>
    %cst_50 = arith.constant 0.000000e+00 : f32
    %250 = vector.broadcast %cst_50 : f32 to vector<1x1x10xf32>
    %251 = arith.select %249, %250, %247 : vector<1x1x10xi1>, vector<1x1x10xf32>
    %c7_i32 = arith.constant 7 : i32
    %252 = vector.broadcast %c7_i32 : i32 to vector<1x1x10xi32>
    %253 = arith.cmpi eq, %222, %252 : vector<1x1x10xi32>
    %254 = vector.broadcast %205 : f32 to vector<1x1x10xf32>
    %255 = arith.select %253, %254, %251 : vector<1x1x10xi1>, vector<1x1x10xf32>
    %c8_i32 = arith.constant 8 : i32
    %256 = vector.broadcast %c8_i32 : i32 to vector<1x1x10xi32>
    %257 = arith.cmpi eq, %222, %256 : vector<1x1x10xi32>
    %258 = vector.broadcast %209 : f32 to vector<1x1x10xf32>
    %259 = arith.select %257, %258, %255 : vector<1x1x10xi1>, vector<1x1x10xf32>
    %c9_i32 = arith.constant 9 : i32
    %260 = vector.broadcast %c9_i32 : i32 to vector<1x1x10xi32>
    %261 = arith.cmpi eq, %222, %260 : vector<1x1x10xi32>
    %262 = vector.broadcast %213 : f32 to vector<1x1x10xf32>
    %263 = arith.select %261, %262, %259 : vector<1x1x10xi1>, vector<1x1x10xf32>
    %c0_i32_51 = arith.constant 0 : i32
    %264 = arith.cmpi eq, %arg1, %c0_i32_51 : i32
    %265 = arith.extui %264 : i1 to i32
    %c0_i32_52 = arith.constant 0 : i32
    %266 = arith.cmpi ne, %265, %c0_i32_52 : i32
    scf.if %266 {
      %cst_59 = arith.constant 0.000000e+00 : f32
      %270 = vector.broadcast %cst_59 : f32 to vector<1x1x10xf32>
      %c0_60 = arith.constant 0 : index
      %c0_61 = arith.constant 0 : index
      %c0_62 = arith.constant 0 : index
      %271 = vector.load %arg9[%c0_60, %c0_61, %c0_62] : memref<1x1x10xf32, #tpu.memory_space<vmem>>, vector<1x1x10xf32>
      tpu.vector_store %arg9[%c0_60, %c0_61, %c0_62], %270 {strides = array<i32>} : memref<1x1x10xf32, #tpu.memory_space<vmem>>, vector<1x1x10xf32>,
    } else {
    }
    %c0_53 = arith.constant 0 : index
    %c0_54 = arith.constant 0 : index
    %c0_55 = arith.constant 0 : index
    %267 = vector.load %arg9[%c0_53, %c0_54, %c0_55] : memref<1x1x10xf32, #tpu.memory_space<vmem>>, vector<1x1x10xf32>
    %268 = arith.addf %267, %263 : vector<1x1x10xf32>
    %c0_56 = arith.constant 0 : index
    %c0_57 = arith.constant 0 : index
    %c0_58 = arith.constant 0 : index
    %269 = vector.load %arg9[%c0_56, %c0_57, %c0_58] : memref<1x1x10xf32, #tpu.memory_space<vmem>>, vector<1x1x10xf32>
    tpu.vector_store %arg9[%c0_56, %c0_57, %c0_58], %268 {strides = array<i32>} : memref<1x1x10xf32, #tpu.memory_space<vmem>>, vector<1x1x10xf32>,
    return
  }
  func.func @transform_0(%arg0: i32, %arg1: i32) -> (i32, i32) {
    %c0_i32 = arith.constant 0 : i32
    %c0_i32_0 = arith.constant 0 : i32
    %c0_i32_1 = arith.constant 0 : i32
    return %c0_i32, %c0_i32_0 : i32, i32
  }
  func.func @transform_1(%arg0: i32, %arg1: i32) -> (i32, i32) {
    %c0_i32 = arith.constant 0 : i32
    %c0_i32_0 = arith.constant 0 : i32
    %c0_i32_1 = arith.constant 0 : i32
    return %c0_i32, %c0_i32_0 : i32, i32
  }
  func.func @transform_2(%arg0: i32, %arg1: i32) -> (i32, i32) {
    %c0_i32 = arith.constant 0 : i32
    %c0_i32_0 = arith.constant 0 : i32
    %c0_i32_1 = arith.constant 0 : i32
    return %c0_i32, %c0_i32_0 : i32, i32
  }
  func.func @transform_3(%arg0: i32, %arg1: i32) -> (i32, i32) {
    %c0_i32 = arith.constant 0 : i32
    %c0_i32_0 = arith.constant 0 : i32
    %c0_i32_1 = arith.constant 0 : i32
    return %c0_i32, %c0_i32_0 : i32, i32
  }
  func.func @transform_4(%arg0: i32, %arg1: i32) -> (i32, i32, i32) {
    %c0_i32 = arith.constant 0 : i32
    %c0_i32_0 = arith.constant 0 : i32
    return %arg0, %arg1, %c0_i32 : i32, i32, i32
  }
  func.func @transform_5(%arg0: i32, %arg1: i32) -> (i32, i32, i32) {
    %c0_i32 = arith.constant 0 : i32
    %c0_i32_0 = arith.constant 0 : i32
    return %arg0, %arg1, %c0_i32 : i32, i32, i32
  }
  func.func @transform_6(%arg0: i32, %arg1: i32) -> (i32, i32, i32) {
    %c0_i32 = arith.constant 0 : i32
    %c0_i32_0 = arith.constant 0 : i32
    return %arg0, %arg1, %c0_i32 : i32, i32, i32
  }
  func.func @transform_7(%arg0: i32, %arg1: i32) -> (i32, i32, i32) {
    %c0_i32 = arith.constant 0 : i32
    %c0_i32_0 = arith.constant 0 : i32
    %c0_i32_1 = arith.constant 0 : i32
    return %arg0, %c0_i32, %c0_i32_0 : i32, i32, i32
  }
}

</mosaic_0001>

<llo_original>
// kernel: tgan_losses_g.2
$region0: #{tgan_losses_g.2}
  #allocation0 [shape = 'u32[]', space=smem, size = 0x4, offset = 0x4, fixed_abs, tag = 'smem constant byte address 0x4 - core index']
  #allocation1 [shape = 'u32[144,128]{1,0:T(1,128)}', space=vmem, size = 0x12000, scoped, tag = 'internal scratch']
  #allocation2 [shape = 'f32[32,256]{1,0:T(8,128)}', space=vmem, size = 0x8000, scoped, tag = 'scratch operand']
  #allocation3 [shape = 'f32[16,512]{1,0:T(8,128)}', space=vmem, size = 0x8000, scoped, tag = 'scratch operand']
  %s0 = inlined_call_operand.vmem [shape: f32[3,1], index: 0, kind: input, shape index: {}]
  %s1 = inlined_call_operand.vmem [shape: f32[3,1], index: 1, kind: input, shape index: {}]
  %s2 = inlined_call_operand.vmem [shape: f32[2,16,256], index: 2, kind: input, shape index: {}]
  %s3 = inlined_call_operand.vmem [shape: s32[2,16,256], index: 3, kind: input, shape index: {}]
  %s4 = inlined_call_operand.vmem [shape: bf16[2,16,256], index: 4, kind: output, shape index: {}]
  %s5 = sld [smem:[#allocation0]]
  $region49: #{tgan_losses_g.2} parent=0
    _
  %s7 = ssub.s32 1, %s5
  %s8 = scalar_select 0, %s7, %s5
  loop: start=0, step=1, limit=4
  $region2: #{tgan_losses_g.2} parent=0 // loop_pre_header
    _
  $region3: #{tgan_losses_g.2} parent=0 // loop_header
    %s10 = sphi 0, %s14
    %p11 = scmp.ge.s32.totalorder %s10, 4
    %s18 = sphi 0, %s18
    %s20 = sphi 0, %s18
    %s21 = sphi 0, %s20
    %s35 = sphi 0, %s21
    %s39 = sphi 0, %s39
    %s41 = sphi 0, %s39
    %s42 = sphi 0, %s41
    %s56 = sphi 0, %s42
    %s62 = sphi 0, %s64
    %s65 = sphi 0, %s62
    %s66 = sphi 0, %s65
    %s82 = sphi 0, %s66
    %s88 = sphi 0, %s90
    %s91 = sphi 0, %s88
    %s92 = sphi 0, %s91
    %s108 = sphi 0, %s92
    %s114 = sphi 0, %s116
    %s117 = sphi 0, %s114
    %s118 = sphi 0, %s117
    %s134 = sphi 0, %s118
  $region4: #{tgan_losses_g.2} parent=0 // loop_header_branch
    %13 = sbr.rel (%p11) target = $region8
  $region5: #{tgan_losses_g.2} parent=0 // loop_body
    %s15 = ssub.s32 %s10, 1
    %s16 = ssub.s32 %s10, 2
    %s17 = sadd.s32 %s10, 1
    %s19 = sadd.s32 %s18, 1
    %p22 = scmp.eq.s32.totalorder %s10, 1
    %p23 = scmp.ne.s32.totalorder %s18, %s20
    %p24 = scmp.eq.s32.totalorder %s10, 0
    %p25 = por %p23, %p24
    %p26 = scmp.ne.s32.totalorder %s18, %s20
    %p27 = scmp.eq.s32.totalorder %s15, 1
    %p28 = por %p26, %p27
    %p29 = scmp.ne.s32.totalorder %s20, %s21
    %p30 = scmp.eq.s32.totalorder %s15, 0
    %p31 = por %p29, %p30
    %p32 = scmp.ne.s32.totalorder %s20, %s21
    %p33 = scmp.eq.s32.totalorder %s16, 1
    %p34 = por %p32, %p33
    %p36 = scmp.ne.s32.totalorder %s21, %s35
    %p37 = scmp.eq.s32.totalorder %s16, 0
    %p38 = por %p36, %p37
    %s40 = sadd.s32 %s39, 1
    %p43 = scmp.eq.s32.totalorder %s10, 1
    %p44 = scmp.ne.s32.totalorder %s39, %s41
    %p45 = scmp.eq.s32.totalorder %s10, 0
    %p46 = por %p44, %p45
    %p47 = scmp.ne.s32.totalorder %s39, %s41
    %p48 = scmp.eq.s32.totalorder %s15, 1
    %p49 = por %p47, %p48
    %p50 = scmp.ne.s32.totalorder %s41, %s42
    %p51 = scmp.eq.s32.totalorder %s15, 0
    %p52 = por %p50, %p51
    %p53 = scmp.ne.s32.totalorder %s41, %s42
    %p54 = scmp.eq.s32.totalorder %s16, 1
    %p55 = por %p53, %p54
    %p57 = scmp.ne.s32.totalorder %s42, %s56
    %p58 = scmp.eq.s32.totalorder %s16, 0
    %p59 = por %p57, %p58
    %s60 = ssub.s32 %s10, %s17
    %p61 = scmp.eq.s32.totalorder %s60, 0
    %s63 = sadd.s32 %s62, 1
    %s64 = scalar_select %p61, %s62, %s63
    %p67 = pneg %p61
    %p68 = scmp.eq.s32.totalorder %s10, 1
    %p69 = por %p67, %p68
    %p70 = scmp.ne.s32.totalorder %s62, %s65
    %p71 = scmp.eq.s32.totalorder %s10, 0
    %p72 = por %p70, %p71
    %p73 = scmp.ne.s32.totalorder %s62, %s65
    %p74 = scmp.eq.s32.totalorder %s15, 1
    %p75 = por %p73, %p74
    %p76 = scmp.ne.s32.totalorder %s65, %s66
    %p77 = scmp.eq.s32.totalorder %s15, 0
    %p78 = por %p76, %p77
    %p79 = scmp.ne.s32.totalorder %s65, %s66
    %p80 = scmp.eq.s32.totalorder %s16, 1
    %p81 = por %p79, %p80
    %p83 = scmp.ne.s32.totalorder %s66, %s82
    %p84 = scmp.eq.s32.totalorder %s16, 0
    %p85 = por %p83, %p84
    %s86 = ssub.s32 %s10, %s17
    %p87 = scmp.eq.s32.totalorder %s86, 0
    %s89 = sadd.s32 %s88, 1
    %s90 = scalar_select %p87, %s88, %s89
    %p93 = pneg %p87
    %p94 = scmp.eq.s32.totalorder %s10, 1
    %p95 = por %p93, %p94
    %p96 = scmp.ne.s32.totalorder %s88, %s91
    %p97 = scmp.eq.s32.totalorder %s10, 0
    %p98 = por %p96, %p97
    %p99 = scmp.ne.s32.totalorder %s88, %s91
    %p100 = scmp.eq.s32.totalorder %s15, 1
    %p101 = por %p99, %p100
    %p102 = scmp.ne.s32.totalorder %s91, %s92
    %p103 = scmp.eq.s32.totalorder %s15, 0
    %p104 = por %p102, %p103
    %p105 = scmp.ne.s32.totalorder %s91, %s92
    %p106 = scmp.eq.s32.totalorder %s16, 1
    %p107 = por %p105, %p106
    %p109 = scmp.ne.s32.totalorder %s92, %s108
    %p110 = scmp.eq.s32.totalorder %s16, 0
    %p111 = por %p109, %p110
    %s112 = ssub.s32 %s10, %s17
    %p113 = scmp.eq.s32.totalorder %s112, 0
    %s115 = sadd.s32 %s114, 1
    %s116 = scalar_select %p113, %s114, %s115
    %p119 = pneg %p113
    %p120 = scmp.eq.s32.totalorder %s10, 1
    %p121 = por %p119, %p120
    %p122 = scmp.ne.s32.totalorder %s114, %s117
    %p123 = scmp.eq.s32.totalorder %s10, 0
    %p124 = por %p122, %p123
    %p125 = scmp.ne.s32.totalorder %s114, %s117
    %p126 = scmp.eq.s32.totalorder %s15, 1
    %p127 = por %p125, %p126
    %p128 = scmp.ne.s32.totalorder %s117, %s118
    %p129 = scmp.eq.s32.totalorder %s15, 0
    %p130 = por %p128, %p129
    %p131 = scmp.ne.s32.totalorder %s117, %s118
    %p132 = scmp.eq.s32.totalorder %s16, 1
    %p133 = por %p131, %p132
    %p135 = scmp.ne.s32.totalorder %s118, %s134
    %p136 = scmp.eq.s32.totalorder %s16, 0
    %p137 = por %p135, %p136
    %p138 = scmp.le.s32.totalorder 1, %s10
    %p139 = scmp.lt.s32.totalorder %s10, 3
    %p140 = pnand %p138, %p139
    %p141 = pneg %p140
    // Predicated region
    $region9: #{tgan_losses_g.2} parent=5 // pred_check
      _
    $region10: #{tgan_losses_g.2} parent=5 // pred_check_branch
      %143 = sbr.rel (%p140) target = $region12
    $region11: #{tgan_losses_g.2} parent=5 // pred_region
      %s144 = ssub.s32 %s10, 1
      // Predicated region
      $region13: #{tgan_losses_g.2} parent=11 // pred_check
        %p145 = pneg %p31
      $region14: #{tgan_losses_g.2} parent=11 // pred_check_branch
        %147 = sbr.rel (%p145) target = $region16
      $region15: #{tgan_losses_g.2} parent=11 // pred_region
        _
      $region16: #{tgan_losses_g.2} parent=11 // pred_fallthru
        _
      // Predicated region
      $region17: #{tgan_losses_g.2} parent=11 // pred_check
        %p148 = pneg %p52
      $region18: #{tgan_losses_g.2} parent=11 // pred_check_branch
        %150 = sbr.rel (%p148) target = $region20
      $region19: #{tgan_losses_g.2} parent=11 // pred_region
        _
      $region20: #{tgan_losses_g.2} parent=11 // pred_fallthru
        _
    $region12: #{tgan_losses_g.2} parent=5 // pred_fallthru
      _
    %p151 = scmp.lt.s32.totalorder %s10, 2
    // Predicated region
    $region21: #{tgan_losses_g.2} parent=5 // pred_check
      %p152 = pneg %p151
    $region22: #{tgan_losses_g.2} parent=5 // pred_check_branch
      %154 = sbr.rel (%p152) target = $region24
    $region23: #{tgan_losses_g.2} parent=5 // pred_region
      // Predicated region
      $region25: #{tgan_losses_g.2} parent=23 // pred_check
        %p155 = pneg %p72
      $region26: #{tgan_losses_g.2} parent=23 // pred_check_branch
        %157 = sbr.rel (%p155) target = $region28
      $region27: #{tgan_losses_g.2} parent=23 // pred_region
        %p158 = scmp.lt.s32.totalorder %s10, 1
        %s159 = scalar_select %p158, %s10, 1
        %s160 = smul.addr %s159, 4
        %s161 = smul.addr %s160, 8
        %s162 = scalar_lea.vmem %s2, %s161
      $region28: #{tgan_losses_g.2} parent=23 // pred_fallthru
        _
      // Predicated region
      $region29: #{tgan_losses_g.2} parent=23 // pred_check
        %p163 = pneg %p98
      $region30: #{tgan_losses_g.2} parent=23 // pred_check_branch
        %165 = sbr.rel (%p163) target = $region32
      $region31: #{tgan_losses_g.2} parent=23 // pred_region
        %p166 = scmp.lt.s32.totalorder %s10, 1
        %s167 = scalar_select %p166, %s10, 1
        %s168 = smul.addr %s167, 4
        %s169 = smul.addr %s168, 8
        %s170 = scalar_lea.vmem %s3, %s169
      $region32: #{tgan_losses_g.2} parent=23 // pred_fallthru
        _
    $region24: #{tgan_losses_g.2} parent=5 // pred_fallthru
      _
    %p171 = scmp.le.s32.totalorder 1, %s10
    %p172 = scmp.lt.s32.totalorder %s10, 3
    %p173 = pnand %p171, %p172
    %p174 = pneg %p173
    // Predicated region
    $region33: #{tgan_losses_g.2} parent=5 // pred_check
      _
    $region34: #{tgan_losses_g.2} parent=5 // pred_check_branch
      %176 = sbr.rel (%p173) target = $region36
    $region35: #{tgan_losses_g.2} parent=5 // pred_region
      %s177 = ssub.s32 %s10, 1
      %p178 = pneg %p31
      %p179 = pneg %p28
      %p180 = pneg %p52
      %p181 = pneg %p49
      %p182 = scmp.lt.s32.totalorder %s15, 1
      %s183 = scalar_select %p182, %s15, 1
      %s184 = smul.addr %s183, 4
      %s185 = smul.addr %s184, 8
      %s186 = scalar_lea.vmem %s2, %s185
      %p187 = pneg %p78
      %p188 = pneg %p75
      %p189 = scmp.lt.s32.totalorder %s15, 1
      %s190 = scalar_select %p189, %s15, 1
      %s191 = smul.addr %s190, 4
      %s192 = smul.addr %s191, 8
      %s193 = scalar_lea.vmem %s3, %s192
      %p194 = pneg %p104
      %p195 = pneg %p101
      %p196 = pneg %p130
      %p197 = pneg %p127
      %p198 = scmp.lt.s32.totalorder %s15, 1
      %s199 = scalar_select %p198, %s15, 1
      %s200 = smul.addr %s199, 4
      %s201 = smul.addr %s200, 4
      %s202 = scalar_lea.vmem %s4, %s201
      %p203 = scmp.lt.s32.totalorder %s15, 1
      %s204 = scalar_select %p203, %s15, 1
      %s205 = smul.addr %s204, 4
      %s206 = smul.addr %s205, 8
      %s207 = scalar_lea.vmem %s2, %s206
      %p208 = scmp.lt.s32.totalorder %s15, 1
      %s209 = scalar_select %p208, %s15, 1
      %s210 = smul.addr %s209, 4
      %s211 = smul.addr %s210, 8
      %s212 = scalar_lea.vmem %s3, %s211
      %p213 = scmp.lt.s32.totalorder %s15, 1
      %s214 = scalar_select %p213, %s15, 1
      %s215 = smul.addr %s214, 4
      %s216 = smul.addr %s215, 4
      %s217 = scalar_lea.vmem %s4, %s216
      %v218 = vld [vmem:[%s207] sm:$0xff]
      %v219 = vld [vmem:[%s207 + $0x8] sm:$0xff]
      %v220 = vld [vmem:[%s207 + $0x10] sm:$0xff]
      %v221 = vld [vmem:[%s207 + $0x18] sm:$0xff]
      %v222 = vld [vmem:[%s212] sm:$0xff]
      %v223 = vld [vmem:[%s212 + $0x8] sm:$0xff]
      %v224 = vld [vmem:[%s212 + $0x10] sm:$0xff]
      %v225 = vld [vmem:[%s212 + $0x18] sm:$0xff]
      %vm226 = vcmp.eq.s32.totalorder %v222, 3
      %vm227 = vcmp.eq.s32.totalorder %v223, 3
      %vm228 = vcmp.eq.s32.totalorder %v224, 3
      %vm229 = vcmp.eq.s32.totalorder %v225, 3
      %vm230 = vcmp.eq.s32.totalorder %v222, 5
      %vm231 = vcmp.eq.s32.totalorder %v223, 5
      %vm232 = vcmp.eq.s32.totalorder %v224, 5
      %vm233 = vcmp.eq.s32.totalorder %v225, 5
      %vm234 = vmor %vm226, %vm230
      %vm235 = vmor %vm227, %vm231
      %vm236 = vmor %vm228, %vm232
      %vm237 = vmor %vm229, %vm233
      %v238 = vsel %vm234, 1, %v222
      %v239 = vsel %vm235, 1, %v223
      %v240 = vsel %vm236, 1, %v224
      %v241 = vsel %vm237, 1, %v225
      %vm242 = vcmp.eq.s32.totalorder %v222, 4
      %vm243 = vcmp.eq.s32.totalorder %v223, 4
      %vm244 = vcmp.eq.s32.totalorder %v224, 4
      %vm245 = vcmp.eq.s32.totalorder %v225, 4
      %vm246 = vcmp.eq.s32.totalorder %v222, 6
      %vm247 = vcmp.eq.s32.totalorder %v223, 6
      %vm248 = vcmp.eq.s32.totalorder %v224, 6
      %vm249 = vcmp.eq.s32.totalorder %v225, 6
      %vm250 = vmor %vm242, %vm246
      %vm251 = vmor %vm243, %vm247
      %vm252 = vmor %vm244, %vm248
      %vm253 = vmor %vm245, %vm249
      %v254 = vsel %vm250, 2, %v238
      %v255 = vsel %vm251, 2, %v239
      %v256 = vsel %vm252, 2, %v240
      %v257 = vsel %vm253, 2, %v241
      %v258 = vld [vmem:[%s0] sm:$0x7]
      %v259 = vld [vmem:[%s1] sm:$0x7]
      %s261 = vtos %v258
      %v262 = vstv %s261
      %v264 = vmul.f32 %v262, %v218
      %v265 = vmul.f32 %v262, %v219
      %v266 = vmul.f32 %v262, %v220
      %v267 = vmul.f32 %v262, %v221
      %s269 = vtos %v259
      %v270 = vstv %s269
      %v272 = vadd.f32 %v264, %v270
      %v273 = vadd.f32 %v265, %v270
      %v274 = vadd.f32 %v266, %v270
      %v275 = vadd.f32 %v267, %v270
      %v276 = vtanh.pop %v272
      %v277 = vtanh.pop %v273
      %v278 = vtanh.pop %v274
      %v279 = vtanh.pop %v275
      %vm280 = vcmp.eq.s32.totalorder %v254, 1
      %vm281 = vcmp.eq.s32.totalorder %v255, 1
      %vm282 = vcmp.eq.s32.totalorder %v256, 1
      %vm283 = vcmp.eq.s32.totalorder %v257, 1
      %v284 = vsel %vm280, 1, 0
      %v285 = vsel %vm281, 1, 0
      %v286 = vsel %vm282, 1, 0
      %v287 = vsel %vm283, 1, 0
      %v288 = vcvt.s32.f32 %v284
      %v289 = vcvt.s32.f32 %v285
      %v290 = vcvt.s32.f32 %v286
      %v291 = vcvt.s32.f32 %v287
      %v292 = vmul.f32 %v276, %v288
      %v293 = vmul.f32 %v277, %v289
      %v294 = vmul.f32 %v278, %v290
      %v295 = vmul.f32 %v279, %v291
      %v296 = vadd.f32 %v292, 0.0
      %v297 = vadd.f32 %v293, 0.0
      %v298 = vadd.f32 %v294, 0.0
      %v299 = vadd.f32 %v295, 0.0
      %v300 = vrot.slane %v258, 1
      %s301 = vtos %v300
      %v302 = vstv %s301
      %v304 = vmul.f32 %v302, %v218
      %v305 = vmul.f32 %v302, %v219
      %v306 = vmul.f32 %v302, %v220
      %v307 = vmul.f32 %v302, %v221
      %v308 = vrot.slane %v259, 1
      %s309 = vtos %v308
      %v310 = vstv %s309
      %v312 = vadd.f32 %v304, %v310
      %v313 = vadd.f32 %v305, %v310
      %v314 = vadd.f32 %v306, %v310
      %v315 = vadd.f32 %v307, %v310
      %v316 = vtanh.pop %v312
      %v317 = vtanh.pop %v313
      %v318 = vtanh.pop %v314
      %v319 = vtanh.pop %v315
      %vm320 = vcmp.eq.s32.totalorder %v254, 3
      %vm321 = vcmp.eq.s32.totalorder %v255, 3
      %vm322 = vcmp.eq.s32.totalorder %v256, 3
      %vm323 = vcmp.eq.s32.totalorder %v257, 3
      %v324 = vsel %vm320, 1, 0
      %v325 = vsel %vm321, 1, 0
      %v326 = vsel %vm322, 1, 0
      %v327 = vsel %vm323, 1, 0
      %v328 = vcvt.s32.f32 %v324
      %v329 = vcvt.s32.f32 %v325
      %v330 = vcvt.s32.f32 %v326
      %v331 = vcvt.s32.f32 %v327
      %v332 = vmul.f32 %v316, %v328
      %v333 = vmul.f32 %v317, %v329
      %v334 = vmul.f32 %v318, %v330
      %v335 = vmul.f32 %v319, %v331
      %v336 = vadd.f32 %v296, %v332
      %v337 = vadd.f32 %v297, %v333
      %v338 = vadd.f32 %v298, %v334
      %v339 = vadd.f32 %v299, %v335
      %v340 = vrot.slane %v258, 2
      %s341 = vtos %v340
      %v342 = vstv %s341
      %v344 = vmul.f32 %v342, %v218
      %v345 = vmul.f32 %v342, %v219
      %v346 = vmul.f32 %v342, %v220
      %v347 = vmul.f32 %v342, %v221
      %v348 = vrot.slane %v259, 2
      %s349 = vtos %v348
      %v350 = vstv %s349
      %v352 = vadd.f32 %v344, %v350
      %v353 = vadd.f32 %v345, %v350
      %v354 = vadd.f32 %v346, %v350
      %v355 = vadd.f32 %v347, %v350
      %v356 = vtanh.pop %v352
      %v357 = vtanh.pop %v353
      %v358 = vtanh.pop %v354
      %v359 = vtanh.pop %v355
      %vm360 = vcmp.eq.s32.totalorder %v254, 5
      %vm361 = vcmp.eq.s32.totalorder %v255, 5
      %vm362 = vcmp.eq.s32.totalorder %v256, 5
      %vm363 = vcmp.eq.s32.totalorder %v257, 5
      %v364 = vsel %vm360, 1, 0
      %v365 = vsel %vm361, 1, 0
      %v366 = vsel %vm362, 1, 0
      %v367 = vsel %vm363, 1, 0
      %v368 = vcvt.s32.f32 %v364
      %v369 = vcvt.s32.f32 %v365
      %v370 = vcvt.s32.f32 %v366
      %v371 = vcvt.s32.f32 %v367
      %v372 = vmul.f32 %v356, %v368
      %v373 = vmul.f32 %v357, %v369
      %v374 = vmul.f32 %v358, %v370
      %v375 = vmul.f32 %v359, %v371
      %v376 = vadd.f32 %v336, %v372
      %v377 = vadd.f32 %v337, %v373
      %v378 = vadd.f32 %v338, %v374
      %v379 = vadd.f32 %v339, %v375
      %380 = vst [vmem:[#allocation2] sm:$0xff] 0.0
      %381 = vst [vmem:[#allocation2 + $0x8] sm:$0xff] 0.0
      %382 = vst [vmem:[#allocation2 + $0x30] sm:$0xff] 0.0
      %383 = vst [vmem:[#allocation2 + $0x38] sm:$0xff] 0.0
      %384 = vst [vmem:[#allocation2 + $0x10] sm:$0xff] %v376
      %385 = vst [vmem:[#allocation2 + $0x18] sm:$0xff] %v377
      %386 = vst [vmem:[#allocation2 + $0x20] sm:$0xff] %v378
      %387 = vst [vmem:[#allocation2 + $0x28] sm:$0xff] %v379
      %v388 = vld [vmem:[#allocation2] sm:$0xe0]
      %v389 = vld [vmem:[#allocation2 + $0x8] sm:$0xe0]
      %v390 = vld [vmem:[#allocation2 + $0x10] sm:$0xff]
      %v391 = vld [vmem:[#allocation2 + $0x18] sm:$0xff]
      %v392 = vld [vmem:[#allocation2 + $0x20] sm:$0x1f]
      %v393 = vld [vmem:[#allocation2 + $0x28] sm:$0x1f]
      %v394 = vmul.f32 %v388, 0.004433048
      %v395 = vmul.f32 %v389, 0.004433048
      %v396 = vmul.f32 %v390, 0.004433048
      %v397 = vmul.f32 %v391, 0.004433048
      %v398 = vmul.f32 %v392, 0.004433048
      %v399 = vmul.f32 %v393, 0.004433048
      %v400 = vld [vmem:[#allocation2] sm:$0xc0]
      %v401 = vld [vmem:[#allocation2 + $0x8] sm:$0xc0]
      %v402 = vld [vmem:[#allocation2 + $0x20] sm:$0x3f]
      %v403 = vld [vmem:[#allocation2 + $0x28] sm:$0x3f]
      %v404 = vmul.f32 %v400, 0.054005582
      %v405 = vmul.f32 %v401, 0.054005582
      %v406 = vmul.f32 %v390, 0.054005582
      %v407 = vmul.f32 %v391, 0.054005582
      %v408 = vmul.f32 %v402, 0.054005582
      %v409 = vmul.f32 %v403, 0.054005582
      %vm416 = vcmask 1046528
      %v417 = vrot.slane %v404, 1
      %v418 = vrot.slane %v406, 1
      %v419 = vsel %vm416, %v417, %v418
      %v420 = vrot.slane %v405, 1
      %v421 = vrot.slane %v407, 1
      %v422 = vsel %vm416, %v420, %v421
      %v423 = vrot.slane %v408, 1
      %v424 = vsel %vm416, %v418, %v423
      %v425 = vrot.slane %v409, 1
      %v426 = vsel %vm416, %v421, %v425
      %v433 = vadd.f32 %v394, %v419
      %v434 = vadd.f32 %v395, %v422
      %v435 = vadd.f32 %v396, %v424
      %v436 = vadd.f32 %v397, %v426
      %v437 = vadd.f32 %v398, %v423
      %v438 = vadd.f32 %v399, %v425
      %v439 = vld [vmem:[#allocation2] sm:$0x80]
      %v440 = vld [vmem:[#allocation2 + $0x8] sm:$0x80]
      %v441 = vld [vmem:[#allocation2 + $0x20] sm:$0x7f]
      %v442 = vld [vmem:[#allocation2 + $0x28] sm:$0x7f]
      %v443 = vmul.f32 %v439, 0.24203622
      %v444 = vmul.f32 %v440, 0.24203622
      %v445 = vmul.f32 %v390, 0.24203622
      %v446 = vmul.f32 %v391, 0.24203622
      %v447 = vmul.f32 %v441, 0.24203622
      %v448 = vmul.f32 %v442, 0.24203622
      %vm455 = vcmask 1045504
      %v456 = vrot.slane %v443, 2
      %v457 = vrot.slane %v445, 2
      %v458 = vsel %vm455, %v456, %v457
      %v459 = vrot.slane %v444, 2
      %v460 = vrot.slane %v446, 2
      %v461 = vsel %vm455, %v459, %v460
      %v462 = vrot.slane %v447, 2
      %v463 = vsel %vm455, %v457, %v462
      %v464 = vrot.slane %v448, 2
      %v465 = vsel %vm455, %v460, %v464
      %v472 = vadd.f32 %v433, %v458
      %v473 = vadd.f32 %v434, %v461
      %v474 = vadd.f32 %v435, %v463
      %v475 = vadd.f32 %v436, %v465
      %v476 = vadd.f32 %v437, %v462
      %v477 = vadd.f32 %v438, %v464
      %v478 = vld [vmem:[#allocation2 + $0x20] sm:$0xff]
      %v479 = vld [vmem:[#allocation2 + $0x28] sm:$0xff]
      %v480 = vmul.f32 %v390, 0.39905027
      %v481 = vmul.f32 %v391, 0.39905027
      %v482 = vmul.f32 %v478, 0.39905027
      %v483 = vmul.f32 %v479, 0.39905027
      %vm488 = vcmask 1044480
      %v489 = vrot.slane %v480, 3
      %v490 = vrot.slane %v481, 3
      %v491 = vrot.slane %v482, 3
      %v492 = vsel %vm488, %v489, %v491
      %v493 = vrot.slane %v483, 3
      %v494 = vsel %vm488, %v490, %v493
      %v501 = vadd.f32 %v472, %v489
      %v502 = vadd.f32 %v473, %v490
      %v503 = vadd.f32 %v474, %v492
      %v504 = vadd.f32 %v475, %v494
      %v505 = vadd.f32 %v476, %v491
      %v506 = vadd.f32 %v477, %v493
      %v507 = vld [vmem:[#allocation2 + $0x10] sm:$0xfe]
      %v508 = vld [vmem:[#allocation2 + $0x18] sm:$0xfe]
      %v509 = vld [vmem:[#allocation2 + $0x20] sm:$0xff]
      %v510 = vld [vmem:[#allocation2 + $0x28] sm:$0xff]
      %v511 = vld [vmem:[#allocation2 + $0x30] sm:$0x1]
      %v512 = vld [vmem:[#allocation2 + $0x38] sm:$0x1]
      %v513 = vmul.f32 %v507, 0.24203622
      %v514 = vmul.f32 %v508, 0.24203622
      %v515 = vmul.f32 %v509, 0.24203622
      %v516 = vmul.f32 %v510, 0.24203622
      %v517 = vmul.f32 %v511, 0.24203622
      %v518 = vmul.f32 %v512, 0.24203622
      %vm525 = vcmask 1043456
      %v526 = vrot.slane %v513, 4
      %v527 = vrot.slane %v514, 4
      %v528 = vrot.slane %v515, 4
      %v529 = vsel %vm525, %v526, %v528
      %v530 = vrot.slane %v516, 4
      %v531 = vsel %vm525, %v527, %v530
      %v532 = vrot.slane %v517, 4
      %v533 = vsel %vm525, %v528, %v532
      %v534 = vrot.slane %v518, 4
      %v535 = vsel %vm525, %v530, %v534
      %v542 = vadd.f32 %v501, %v526
      %v543 = vadd.f32 %v502, %v527
      %v544 = vadd.f32 %v503, %v529
      %v545 = vadd.f32 %v504, %v531
      %v546 = vadd.f32 %v505, %v533
      %v547 = vadd.f32 %v506, %v535
      %v548 = vld [vmem:[#allocation2 + $0x10] sm:$0xfc]
      %v549 = vld [vmem:[#allocation2 + $0x18] sm:$0xfc]
      %v550 = vld [vmem:[#allocation2 + $0x30] sm:$0x3]
      %v551 = vld [vmem:[#allocation2 + $0x38] sm:$0x3]
      %v552 = vmul.f32 %v548, 0.054005582
      %v553 = vmul.f32 %v549, 0.054005582
      %v554 = vmul.f32 %v509, 0.054005582
      %v555 = vmul.f32 %v510, 0.054005582
      %v556 = vmul.f32 %v550, 0.054005582
      %v557 = vmul.f32 %v551, 0.054005582
      %vm564 = vcmask 1042432
      %v565 = vrot.slane %v552, 5
      %v566 = vrot.slane %v553, 5
      %v567 = vrot.slane %v554, 5
      %v568 = vsel %vm564, %v565, %v567
      %v569 = vrot.slane %v555, 5
      %v570 = vsel %vm564, %v566, %v569
      %v571 = vrot.slane %v556, 5
      %v572 = vsel %vm564, %v567, %v571
      %v573 = vrot.slane %v557, 5
      %v574 = vsel %vm564, %v569, %v573
      %v581 = vadd.f32 %v542, %v565
      %v582 = vadd.f32 %v543, %v566
      %v583 = vadd.f32 %v544, %v568
      %v584 = vadd.f32 %v545, %v570
      %v585 = vadd.f32 %v546, %v572
      %v586 = vadd.f32 %v547, %v574
      %v587 = vld [vmem:[#allocation2 + $0x10] sm:$0xf8]
      %v588 = vld [vmem:[#allocation2 + $0x18] sm:$0xf8]
      %v589 = vld [vmem:[#allocation2 + $0x30] sm:$0x7]
      %v590 = vld [vmem:[#allocation2 + $0x38] sm:$0x7]
      %v591 = vmul.f32 %v587, 0.004433048
      %v592 = vmul.f32 %v588, 0.004433048
      %v593 = vmul.f32 %v509, 0.004433048
      %v594 = vmul.f32 %v510, 0.004433048
      %v595 = vmul.f32 %v589, 0.004433048
      %v596 = vmul.f32 %v590, 0.004433048
      %vm603 = vcmask 1041408
      %v604 = vrot.slane %v591, 6
      %v605 = vrot.slane %v592, 6
      %v606 = vrot.slane %v593, 6
      %v607 = vsel %vm603, %v604, %v606
      %v608 = vrot.slane %v594, 6
      %v609 = vsel %vm603, %v605, %v608
      %v610 = vrot.slane %v595, 6
      %v611 = vsel %vm603, %v606, %v610
      %v612 = vrot.slane %v596, 6
      %v613 = vsel %vm603, %v608, %v612
      %v620 = vadd.f32 %v581, %v604
      %v621 = vadd.f32 %v582, %v605
      %v622 = vadd.f32 %v583, %v607
      %v623 = vadd.f32 %v584, %v609
      %v624 = vadd.f32 %v585, %v611
      %v625 = vadd.f32 %v586, %v613
      %626 = vst [vmem:[#allocation3] sm:$0xff] 0.0
      %627 = vst [vmem:[#allocation3 + $0x20] sm:$0xff] 0.0
      %628 = vst [vmem:[#allocation3 + $0x18] sm:$0xff] 0.0
      %629 = vst [vmem:[#allocation3 + $0x38] sm:$0xff] 0.0
      %v636 = vrot.slane %v620, 5
      %v637 = vrot.slane %v622, 5
      %v638 = vsel %vm564, %v636, %v637
      %v639 = vrot.slane %v621, 5
      %v640 = vrot.slane %v623, 5
      %v641 = vsel %vm564, %v639, %v640
      %v642 = vrot.slane %v624, 5
      %v643 = vsel %vm564, %v637, %v642
      %v644 = vrot.slane %v625, 5
      %v645 = vsel %vm564, %v640, %v644
      %650 = vst [vmem:[#allocation3 + $0x8] sm:$0xff] %v638
      %651 = vst [vmem:[#allocation3 + $0x10] sm:$0xff] %v641
      %652 = vst [vmem:[#allocation3 + $0x28] sm:$0xff] %v643
      %653 = vst [vmem:[#allocation3 + $0x30] sm:$0xff] %v645
      %v654 = vld [vmem:[#allocation3] sm:$0xff]
      %v655 = vld [vmem:[#allocation3 + $0x8] sm:$0xff]
      %v656 = vld [vmem:[#allocation3 + $0x10] sm:$0xff]
      %v657 = vld [vmem:[#allocation3 + $0x20] sm:$0xff]
      %v658 = vld [vmem:[#allocation3 + $0x28] sm:$0xff]
      %v659 = vld [vmem:[#allocation3 + $0x30] sm:$0xff]
      %v660 = vmul.f32 %v654, 0.004433048
      %v661 = vmul.f32 %v655, 0.004433048
      %v662 = vmul.f32 %v656, 0.004433048
      %v663 = vmul.f32 %v657, 0.004433048
      %v664 = vmul.f32 %v658, 0.004433048
      %v665 = vmul.f32 %v659, 0.004433048
      %v666 = vmul.f32 %v654, 0.054005582
      %v667 = vmul.f32 %v655, 0.054005582
      %v668 = vmul.f32 %v656, 0.054005582
      %v669 = vmul.f32 %v657, 0.054005582
      %v670 = vmul.f32 %v658, 0.054005582
      %v671 = vmul.f32 %v659, 0.054005582
      %678 = vrot.lane.b32.xlu0 %v666, 112
      %v679 = vpop.permute.xlu0 %678
      %680 = vrot.lane.b32.xlu0 %v667, 112
      %v681 = vpop.permute.xlu0 %680
      %682 = vrot.lane.b32.xlu0 %v668, 112
      %v683 = vpop.permute.xlu0 %682
      %684 = vrot.lane.b32.xlu0 %v669, 112
      %v685 = vpop.permute.xlu0 %684
      %686 = vrot.lane.b32.xlu0 %v670, 112
      %v687 = vpop.permute.xlu0 %686
      %688 = vrot.lane.b32.xlu0 %v671, 112
      %v689 = vpop.permute.xlu0 %688
      %vm690 = vcmask 916480
      %v691 = vsel %vm690, %v679, %v681
      %v692 = vsel %vm690, %v681, %v683
      %v693 = vsel %vm690, %v685, %v687
      %v694 = vsel %vm690, %v687, %v689
      %v701 = vadd.f32 %v660, %v691
      %v702 = vadd.f32 %v661, %v692
      %v703 = vadd.f32 %v662, %v683
      %v704 = vadd.f32 %v663, %v693
      %v705 = vadd.f32 %v664, %v694
      %v706 = vadd.f32 %v665, %v689
      %v707 = vmul.f32 %v654, 0.24203622
      %v708 = vmul.f32 %v655, 0.24203622
      %v709 = vmul.f32 %v656, 0.24203622
      %v710 = vmul.f32 %v657, 0.24203622
      %v711 = vmul.f32 %v658, 0.24203622
      %v712 = vmul.f32 %v659, 0.24203622
      %719 = vrot.lane.b32.xlu0 %v707, 96
      %v720 = vpop.permute.xlu0 %719
      %721 = vrot.lane.b32.xlu0 %v708, 96
      %v722 = vpop.permute.xlu0 %721
      %723 = vrot.lane.b32.xlu0 %v709, 96
      %v724 = vpop.permute.xlu0 %723
      %725 = vrot.lane.b32.xlu0 %v710, 96
      %v726 = vpop.permute.xlu0 %725
      %727 = vrot.lane.b32.xlu0 %v711, 96
      %v728 = vpop.permute.xlu0 %727
      %729 = vrot.lane.b32.xlu0 %v712, 96
      %v730 = vpop.permute.xlu0 %729
      %vm731 = vcmask 785408
      %v732 = vsel %vm731, %v720, %v722
      %v733 = vsel %vm731, %v722, %v724
      %v734 = vsel %vm731, %v726, %v728
      %v735 = vsel %vm731, %v728, %v730
      %v742 = vadd.f32 %v701, %v732
      %v743 = vadd.f32 %v702, %v733
      %v744 = vadd.f32 %v703, %v724
      %v745 = vadd.f32 %v704, %v734
      %v746 = vadd.f32 %v705, %v735
      %v747 = vadd.f32 %v706, %v730
      %v748 = vmul.f32 %v655, 0.39905027
      %v749 = vmul.f32 %v656, 0.39905027
      %v750 = vmul.f32 %v658, 0.39905027
      %v751 = vmul.f32 %v659, 0.39905027
      %756 = vrot.lane.b32.xlu0 %v748, 80
      %v757 = vpop.permute.xlu0 %756
      %758 = vrot.lane.b32.xlu0 %v749, 80
      %v759 = vpop.permute.xlu0 %758
      %760 = vrot.lane.b32.xlu0 %v750, 80
      %v761 = vpop.permute.xlu0 %760
      %762 = vrot.lane.b32.xlu0 %v751, 80
      %v763 = vpop.permute.xlu0 %762
      %vm764 = vcmask 654336
      %v765 = vsel %vm764, %v757, %v759
      %v766 = vsel %vm764, %v761, %v763
      %v773 = vadd.f32 %v742, %v757
      %v774 = vadd.f32 %v743, %v765
      %v775 = vadd.f32 %v744, %v759
      %v776 = vadd.f32 %v745, %v761
      %v777 = vadd.f32 %v746, %v766
      %v778 = vadd.f32 %v747, %v763
      %v779 = vld [vmem:[#allocation3 + $0x8] sm:$0xff]
      %v780 = vld [vmem:[#allocation3 + $0x10] sm:$0xff]
      %v781 = vld [vmem:[#allocation3 + $0x18] sm:$0xff]
      %v782 = vld [vmem:[#allocation3 + $0x28] sm:$0xff]
      %v783 = vld [vmem:[#allocation3 + $0x30] sm:$0xff]
      %v784 = vld [vmem:[#allocation3 + $0x38] sm:$0xff]
      %v785 = vmul.f32 %v779, 0.24203622
      %v786 = vmul.f32 %v780, 0.24203622
      %v787 = vmul.f32 %v781, 0.24203622
      %v788 = vmul.f32 %v782, 0.24203622
      %v789 = vmul.f32 %v783, 0.24203622
      %v790 = vmul.f32 %v784, 0.24203622
      %797 = vrot.lane.b32.xlu0 %v785, 64
      %v798 = vpop.permute.xlu0 %797
      %799 = vrot.lane.b32.xlu0 %v786, 64
      %v800 = vpop.permute.xlu0 %799
      %801 = vrot.lane.b32.xlu0 %v787, 64
      %v802 = vpop.permute.xlu0 %801
      %803 = vrot.lane.b32.xlu0 %v788, 64
      %v804 = vpop.permute.xlu0 %803
      %805 = vrot.lane.b32.xlu0 %v789, 64
      %v806 = vpop.permute.xlu0 %805
      %807 = vrot.lane.b32.xlu0 %v790, 64
      %v808 = vpop.permute.xlu0 %807
      %vm809 = vcmask 523264
      %v810 = vsel %vm809, %v798, %v800
      %v811 = vsel %vm809, %v800, %v802
      %v812 = vsel %vm809, %v804, %v806
      %v813 = vsel %vm809, %v806, %v808
      %v820 = vadd.f32 %v773, %v798
      %v821 = vadd.f32 %v774, %v810
      %v822 = vadd.f32 %v775, %v811
      %v823 = vadd.f32 %v776, %v804
      %v824 = vadd.f32 %v777, %v812
      %v825 = vadd.f32 %v778, %v813
      %v826 = vmul.f32 %v779, 0.054005582
      %v827 = vmul.f32 %v780, 0.054005582
      %v828 = vmul.f32 %v781, 0.054005582
      %v829 = vmul.f32 %v782, 0.054005582
      %v830 = vmul.f32 %v783, 0.054005582
      %v831 = vmul.f32 %v784, 0.054005582
      %838 = vrot.lane.b32.xlu0 %v826, 48
      %v839 = vpop.permute.xlu0 %838
      %840 = vrot.lane.b32.xlu0 %v827, 48
      %v841 = vpop.permute.xlu0 %840
      %842 = vrot.lane.b32.xlu0 %v828, 48
      %v843 = vpop.permute.xlu0 %842
      %844 = vrot.lane.b32.xlu0 %v829, 48
      %v845 = vpop.permute.xlu0 %844
      %846 = vrot.lane.b32.xlu0 %v830, 48
      %v847 = vpop.permute.xlu0 %846
      %848 = vrot.lane.b32.xlu0 %v831, 48
      %v849 = vpop.permute.xlu0 %848
      %vm850 = vcmask 392192
      %v851 = vsel %vm850, %v839, %v841
      %v852 = vsel %vm850, %v841, %v843
      %v853 = vsel %vm850, %v845, %v847
      %v854 = vsel %vm850, %v847, %v849
      %v861 = vadd.f32 %v820, %v839
      %v862 = vadd.f32 %v821, %v851
      %v863 = vadd.f32 %v822, %v852
      %v864 = vadd.f32 %v823, %v845
      %v865 = vadd.f32 %v824, %v853
      %v866 = vadd.f32 %v825, %v854
      %v867 = vmul.f32 %v779, 0.004433048
      %v868 = vmul.f32 %v780, 0.004433048
      %v869 = vmul.f32 %v781, 0.004433048
      %v870 = vmul.f32 %v782, 0.004433048
      %v871 = vmul.f32 %v783, 0.004433048
      %v872 = vmul.f32 %v784, 0.004433048
      %879 = vrot.lane.b32.xlu0 %v867, 32
      %v880 = vpop.permute.xlu0 %879
      %881 = vrot.lane.b32.xlu0 %v868, 32
      %v882 = vpop.permute.xlu0 %881
      %883 = vrot.lane.b32.xlu0 %v869, 32
      %v884 = vpop.permute.xlu0 %883
      %885 = vrot.lane.b32.xlu0 %v870, 32
      %v886 = vpop.permute.xlu0 %885
      %887 = vrot.lane.b32.xlu0 %v871, 32
      %v888 = vpop.permute.xlu0 %887
      %889 = vrot.lane.b32.xlu0 %v872, 32
      %v890 = vpop.permute.xlu0 %889
      %vm891 = vcmask 261120
      %v892 = vsel %vm891, %v880, %v882
      %v893 = vsel %vm891, %v882, %v884
      %v894 = vsel %vm891, %v886, %v888
      %v895 = vsel %vm891, %v888, %v890
      %v902 = vadd.f32 %v861, %v880
      %v903 = vadd.f32 %v862, %v892
      %v904 = vadd.f32 %v863, %v893
      %v905 = vadd.f32 %v864, %v886
      %v906 = vadd.f32 %v865, %v894
      %v907 = vadd.f32 %v866, %v895
      %914 = vrot.lane.b32.xlu0 %v902, 48
      %v915 = vpop.permute.xlu0 %914
      %916 = vrot.lane.b32.xlu0 %v903, 48
      %v917 = vpop.permute.xlu0 %916
      %918 = vrot.lane.b32.xlu0 %v904, 48
      %v919 = vpop.permute.xlu0 %918
      %920 = vrot.lane.b32.xlu0 %v905, 48
      %v921 = vpop.permute.xlu0 %920
      %922 = vrot.lane.b32.xlu0 %v906, 48
      %v923 = vpop.permute.xlu0 %922
      %924 = vrot.lane.b32.xlu0 %v907, 48
      %v925 = vpop.permute.xlu0 %924
      %v926 = vsel %vm850, %v915, %v917
      %v927 = vsel %vm850, %v917, %v919
      %v928 = vsel %vm850, %v921, %v923
      %v929 = vsel %vm850, %v923, %v925
      %934 = vst [vmem:[#allocation3 + $0x8] sm:$0xff] %v926
      %935 = vst [vmem:[#allocation3 + $0x10] sm:$0xff] %v927
      %936 = vst [vmem:[#allocation3 + $0x28] sm:$0xff] %v928
      %937 = vst [vmem:[#allocation3 + $0x30] sm:$0xff] %v929
      %v938 = vlaneseq
      %v939 = vand.u32 %v938, 127
      %v940 = vadd.s32 %v939, 128
      %vm941 = vcmp.lt.s32.totalorder %v939, 0
      %v942 = vsub.s32 0, %v939
      %v943 = vsel %vm941, %v942, %v939
      %v944 = vshrl.u32 %v943, 4
      %v945 = vand.u32 %v943, 15
      %v946 = vsub.s32 0, %v945
      %v947 = vsel %vm941, %v946, %v945
      %vm948 = vcmp.lt.s32.totalorder %v940, 0
      %v949 = vsub.s32 0, %v940
      %v950 = vsel %vm948, %v949, %v940
      %v951 = vshrl.u32 %v950, 4
      %v952 = vand.u32 %v950, 15
      %v953 = vsub.s32 0, %v952
      %v954 = vsel %vm948, %v953, %v952
      %vm955 = vcmp.ne.s32.totalorder %v947, 0
      %vm956 = vcmp.ne.s32.totalorder %v954, 0
      %vm957 = vcmp.lt.s32.totalorder %v947, 0
      %vm958 = vcmp.lt.s32.totalorder %v954, 0
      %vm959 = vmand %vm957, %vm955
      %vm960 = vmand %vm958, %vm956
      %v961 = vadd.s32 %v947, 16
      %v962 = vadd.s32 %v954, 16
      %v963 = vsel %vm959, %v961, %v947
      %v964 = vsel %vm960, %v962, %v954
      %v965 = vmul.f32 %v902, 0.39905027
      %v966 = vmul.f32 %v903, 0.39905027
      %v967 = vmul.f32 %v904, 0.39905027
      %v968 = vmul.f32 %v905, 0.39905027
      %v969 = vmul.f32 %v906, 0.39905027
      %v970 = vmul.f32 %v907, 0.39905027
      %v971 = vld [vmem:[#allocation3] sm:$0xff]
      %v972 = vld [vmem:[#allocation3 + $0x8] sm:$0xff]
      %v973 = vld [vmem:[#allocation3 + $0x10] sm:$0xff]
      %v974 = vld [vmem:[#allocation3 + $0x20] sm:$0xff]
      %v975 = vld [vmem:[#allocation3 + $0x28] sm:$0xff]
      %v976 = vld [vmem:[#allocation3 + $0x30] sm:$0xff]
      %vm977 = vcmp.ge.s32.totalorder %v963, 3
      %vm978 = vcmp.ge.s32.totalorder %v964, 3
      %985 = vrot.lane.b32.xlu0 %v971, 3
      %v986 = vpop.permute.xlu0 %985
      %987 = vrot.lane.b32.xlu0 %v972, 3
      %v988 = vpop.permute.xlu0 %987
      %989 = vrot.lane.b32.xlu0 %v973, 3
      %v990 = vpop.permute.xlu0 %989
      %991 = vrot.lane.b32.xlu0 %v974, 3
      %v992 = vpop.permute.xlu0 %991
      %993 = vrot.lane.b32.xlu0 %v975, 3
      %v994 = vpop.permute.xlu0 %993
      %995 = vrot.lane.b32.xlu0 %v976, 3
      %v996 = vpop.permute.xlu0 %995
      %vm997 = vcmask 23552
      %v998 = vsel %vm997, %v986, %v988
      %v999 = vsel %vm997, %v988, %v990
      %v1000 = vsel %vm997, %v992, %v994
      %v1001 = vsel %vm997, %v994, %v996
      %v1006 = vsel %vm977, %v998, 0.0
      %v1007 = vsel %vm978, %v999, 0.0
      %v1008 = vsel %vm977, %v1000, 0.0
      %v1009 = vsel %vm978, %v1001, 0.0
      %v1010 = vmul.f32 %v1006, 0.004433048
      %v1011 = vmul.f32 %v1007, 0.004433048
      %v1012 = vmul.f32 %v1008, 0.004433048
      %v1013 = vmul.f32 %v1009, 0.004433048
      %1018 = vrot.lane.b32.xlu0 %v1010, 80
      %v1019 = vpop.permute.xlu0 %1018
      %1020 = vrot.lane.b32.xlu0 %v1011, 80
      %v1021 = vpop.permute.xlu0 %1020
      %1022 = vrot.lane.b32.xlu0 %v1012, 80
      %v1023 = vpop.permute.xlu0 %1022
      %1024 = vrot.lane.b32.xlu0 %v1013, 80
      %v1025 = vpop.permute.xlu0 %1024
      %v1026 = vsel %vm764, %v1019, %v1021
      %v1027 = vsel %vm764, %v1023, %v1025
      %v1034 = vadd.f32 %v965, %v1019
      %v1035 = vadd.f32 %v966, %v1026
      %v1036 = vadd.f32 %v967, %v1021
      %v1037 = vadd.f32 %v968, %v1023
      %v1038 = vadd.f32 %v969, %v1027
      %v1039 = vadd.f32 %v970, %v1025
      %vm1040 = vcmp.ge.s32.totalorder %v963, 2
      %vm1041 = vcmp.ge.s32.totalorder %v964, 2
      %1042 = vrot.lane.b32.xlu0 %v971, 2
      %v1043 = vpop.permute.xlu0 %1042
      %1044 = vrot.lane.b32.xlu0 %v972, 2
      %v1045 = vpop.permute.xlu0 %1044
      %1046 = vrot.lane.b32.xlu0 %v973, 2
      %v1047 = vpop.permute.xlu0 %1046
      %1048 = vrot.lane.b32.xlu0 %v974, 2
      %v1049 = vpop.permute.xlu0 %1048
      %1050 = vrot.lane.b32.xlu0 %v975, 2
      %v1051 = vpop.permute.xlu0 %1050
      %1052 = vrot.lane.b32.xlu0 %v976, 2
      %v1053 = vpop.permute.xlu0 %1052
      %vm1054 = vcmask 15360
      %v1055 = vsel %vm1054, %v1043, %v1045
      %v1056 = vsel %vm1054, %v1045, %v1047
      %v1057 = vsel %vm1054, %v1049, %v1051
      %v1058 = vsel %vm1054, %v1051, %v1053
      %v1063 = vsel %vm1040, %v1055, 0.0
      %v1064 = vsel %vm1041, %v1056, 0.0
      %v1065 = vsel %vm1040, %v1057, 0.0
      %v1066 = vsel %vm1041, %v1058, 0.0
      %v1067 = vmul.f32 %v1063, 0.054005582
      %v1068 = vmul.f32 %v1064, 0.054005582
      %v1069 = vmul.f32 %v1065, 0.054005582
      %v1070 = vmul.f32 %v1066, 0.054005582
      %1075 = vrot.lane.b32.xlu0 %v1067, 80
      %v1076 = vpop.permute.xlu0 %1075
      %1077 = vrot.lane.b32.xlu0 %v1068, 80
      %v1078 = vpop.permute.xlu0 %1077
      %1079 = vrot.lane.b32.xlu0 %v1069, 80
      %v1080 = vpop.permute.xlu0 %1079
      %1081 = vrot.lane.b32.xlu0 %v1070, 80
      %v1082 = vpop.permute.xlu0 %1081
      %v1083 = vsel %vm764, %v1076, %v1078
      %v1084 = vsel %vm764, %v1080, %v1082
      %v1091 = vadd.f32 %v1034, %v1076
      %v1092 = vadd.f32 %v1035, %v1083
      %v1093 = vadd.f32 %v1036, %v1078
      %v1094 = vadd.f32 %v1037, %v1080
      %v1095 = vadd.f32 %v1038, %v1084
      %v1096 = vadd.f32 %v1039, %v1082
      %vm1097 = vcmp.ge.s32.totalorder %v963, 1
      %vm1098 = vcmp.ge.s32.totalorder %v964, 1
      %1099 = vrot.lane.b32.xlu0 %v971, 1
      %v1100 = vpop.permute.xlu0 %1099
      %1101 = vrot.lane.b32.xlu0 %v972, 1
      %v1102 = vpop.permute.xlu0 %1101
      %1103 = vrot.lane.b32.xlu0 %v973, 1
      %v1104 = vpop.permute.xlu0 %1103
      %1105 = vrot.lane.b32.xlu0 %v974, 1
      %v1106 = vpop.permute.xlu0 %1105
      %1107 = vrot.lane.b32.xlu0 %v975, 1
      %v1108 = vpop.permute.xlu0 %1107
      %1109 = vrot.lane.b32.xlu0 %v976, 1
      %v1110 = vpop.permute.xlu0 %1109
      %vm1111 = vcmask 7168
      %v1112 = vsel %vm1111, %v1100, %v1102
      %v1113 = vsel %vm1111, %v1102, %v1104
      %v1114 = vsel %vm1111, %v1106, %v1108
      %v1115 = vsel %vm1111, %v1108, %v1110
      %v1120 = vsel %vm1097, %v1112, 0.0
      %v1121 = vsel %vm1098, %v1113, 0.0
      %v1122 = vsel %vm1097, %v1114, 0.0
      %v1123 = vsel %vm1098, %v1115, 0.0
      %v1124 = vmul.f32 %v1120, 0.24203622
      %v1125 = vmul.f32 %v1121, 0.24203622
      %v1126 = vmul.f32 %v1122, 0.24203622
      %v1127 = vmul.f32 %v1123, 0.24203622
      %1132 = vrot.lane.b32.xlu0 %v1124, 80
      %v1133 = vpop.permute.xlu0 %1132
      %1134 = vrot.lane.b32.xlu0 %v1125, 80
      %v1135 = vpop.permute.xlu0 %1134
      %1136 = vrot.lane.b32.xlu0 %v1126, 80
      %v1137 = vpop.permute.xlu0 %1136
      %1138 = vrot.lane.b32.xlu0 %v1127, 80
      %v1139 = vpop.permute.xlu0 %1138
      %v1140 = vsel %vm764, %v1133, %v1135
      %v1141 = vsel %vm764, %v1137, %v1139
      %v1148 = vadd.f32 %v1091, %v1133
      %v1149 = vadd.f32 %v1092, %v1140
      %v1150 = vadd.f32 %v1093, %v1135
      %v1151 = vadd.f32 %v1094, %v1137
      %v1152 = vadd.f32 %v1095, %v1141
      %v1153 = vadd.f32 %v1096, %v1139
      %v1154 = vld [vmem:[#allocation3 + $0x8] sm:$0xff]
      %v1155 = vld [vmem:[#allocation3 + $0x10] sm:$0xff]
      %v1156 = vld [vmem:[#allocation3 + $0x18] sm:$0xff]
      %v1157 = vld [vmem:[#allocation3 + $0x28] sm:$0xff]
      %v1158 = vld [vmem:[#allocation3 + $0x30] sm:$0xff]
      %v1159 = vld [vmem:[#allocation3 + $0x38] sm:$0xff]
      %vm1160 = vcmp.lt.s32.totalorder %v963, 15
      %vm1161 = vcmp.lt.s32.totalorder %v964, 15
      %1168 = vrot.lane.b32.xlu0 %v1154, 127
      %v1169 = vpop.permute.xlu0 %1168
      %1170 = vrot.lane.b32.xlu0 %v1155, 127
      %v1171 = vpop.permute.xlu0 %1170
      %1172 = vrot.lane.b32.xlu0 %v1156, 127
      %v1173 = vpop.permute.xlu0 %1172
      %1174 = vrot.lane.b32.xlu0 %v1157, 127
      %v1175 = vpop.permute.xlu0 %1174
      %1176 = vrot.lane.b32.xlu0 %v1158, 127
      %v1177 = vpop.permute.xlu0 %1176
      %1178 = vrot.lane.b32.xlu0 %v1159, 127
      %v1179 = vpop.permute.xlu0 %1178
      %vm1180 = vcmask 1039360
      %v1181 = vsel %vm1180, %v1169, %v1171
      %v1182 = vsel %vm1180, %v1171, %v1173
      %v1183 = vsel %vm1180, %v1175, %v1177
      %v1184 = vsel %vm1180, %v1177, %v1179
      %v1189 = vsel %vm1160, %v1181, 0.0
      %v1190 = vsel %vm1161, %v1182, 0.0
      %v1191 = vsel %vm1160, %v1183, 0.0
      %v1192 = vsel %vm1161, %v1184, 0.0
      %v1193 = vmul.f32 %v1189, 0.24203622
      %v1194 = vmul.f32 %v1190, 0.24203622
      %v1195 = vmul.f32 %v1191, 0.24203622
      %v1196 = vmul.f32 %v1192, 0.24203622
      %1201 = vrot.lane.b32.xlu0 %v1193, 80
      %v1202 = vpop.permute.xlu0 %1201
      %1203 = vrot.lane.b32.xlu0 %v1194, 80
      %v1204 = vpop.permute.xlu0 %1203
      %1205 = vrot.lane.b32.xlu0 %v1195, 80
      %v1206 = vpop.permute.xlu0 %1205
      %1207 = vrot.lane.b32.xlu0 %v1196, 80
      %v1208 = vpop.permute.xlu0 %1207
      %v1209 = vsel %vm764, %v1202, %v1204
      %v1210 = vsel %vm764, %v1206, %v1208
      %v1217 = vadd.f32 %v1148, %v1202
      %v1218 = vadd.f32 %v1149, %v1209
      %v1219 = vadd.f32 %v1150, %v1204
      %v1220 = vadd.f32 %v1151, %v1206
      %v1221 = vadd.f32 %v1152, %v1210
      %v1222 = vadd.f32 %v1153, %v1208
      %vm1223 = vcmp.lt.s32.totalorder %v963, 14
      %vm1224 = vcmp.lt.s32.totalorder %v964, 14
      %1225 = vrot.lane.b32.xlu0 %v1154, 126
      %v1226 = vpop.permute.xlu0 %1225
      %1227 = vrot.lane.b32.xlu0 %v1155, 126
      %v1228 = vpop.permute.xlu0 %1227
      %1229 = vrot.lane.b32.xlu0 %v1156, 126
      %v1230 = vpop.permute.xlu0 %1229
      %1231 = vrot.lane.b32.xlu0 %v1157, 126
      %v1232 = vpop.permute.xlu0 %1231
      %1233 = vrot.lane.b32.xlu0 %v1158, 126
      %v1234 = vpop.permute.xlu0 %1233
      %1235 = vrot.lane.b32.xlu0 %v1159, 126
      %v1236 = vpop.permute.xlu0 %1235
      %vm1237 = vcmask 1031168
      %v1238 = vsel %vm1237, %v1226, %v1228
      %v1239 = vsel %vm1237, %v1228, %v1230
      %v1240 = vsel %vm1237, %v1232, %v1234
      %v1241 = vsel %vm1237, %v1234, %v1236
      %v1246 = vsel %vm1223, %v1238, 0.0
      %v1247 = vsel %vm1224, %v1239, 0.0
      %v1248 = vsel %vm1223, %v1240, 0.0
      %v1249 = vsel %vm1224, %v1241, 0.0
      %v1250 = vmul.f32 %v1246, 0.054005582
      %v1251 = vmul.f32 %v1247, 0.054005582
      %v1252 = vmul.f32 %v1248, 0.054005582
      %v1253 = vmul.f32 %v1249, 0.054005582
      %1258 = vrot.lane.b32.xlu0 %v1250, 80
      %v1259 = vpop.permute.xlu0 %1258
      %1260 = vrot.lane.b32.xlu0 %v1251, 80
      %v1261 = vpop.permute.xlu0 %1260
      %1262 = vrot.lane.b32.xlu0 %v1252, 80
      %v1263 = vpop.permute.xlu0 %1262
      %1264 = vrot.lane.b32.xlu0 %v1253, 80
      %v1265 = vpop.permute.xlu0 %1264
      %v1266 = vsel %vm764, %v1259, %v1261
      %v1267 = vsel %vm764, %v1263, %v1265
      %v1274 = vadd.f32 %v1217, %v1259
      %v1275 = vadd.f32 %v1218, %v1266
      %v1276 = vadd.f32 %v1219, %v1261
      %v1277 = vadd.f32 %v1220, %v1263
      %v1278 = vadd.f32 %v1221, %v1267
      %v1279 = vadd.f32 %v1222, %v1265
      %vm1280 = vcmp.lt.s32.totalorder %v963, 13
      %vm1281 = vcmp.lt.s32.totalorder %v964, 13
      %1282 = vrot.lane.b32.xlu0 %v1154, 125
      %v1283 = vpop.permute.xlu0 %1282
      %1284 = vrot.lane.b32.xlu0 %v1155, 125
      %v1285 = vpop.permute.xlu0 %1284
      %1286 = vrot.lane.b32.xlu0 %v1156, 125
      %v1287 = vpop.permute.xlu0 %1286
      %1288 = vrot.lane.b32.xlu0 %v1157, 125
      %v1289 = vpop.permute.xlu0 %1288
      %1290 = vrot.lane.b32.xlu0 %v1158, 125
      %v1291 = vpop.permute.xlu0 %1290
      %1292 = vrot.lane.b32.xlu0 %v1159, 125
      %v1293 = vpop.permute.xlu0 %1292
      %vm1294 = vcmask 1022976
      %v1295 = vsel %vm1294, %v1283, %v1285
      %v1296 = vsel %vm1294, %v1285, %v1287
      %v1297 = vsel %vm1294, %v1289, %v1291
      %v1298 = vsel %vm1294, %v1291, %v1293
      %v1303 = vsel %vm1280, %v1295, 0.0
      %v1304 = vsel %vm1281, %v1296, 0.0
      %v1305 = vsel %vm1280, %v1297, 0.0
      %v1306 = vsel %vm1281, %v1298, 0.0
      %v1307 = vmul.f32 %v1303, 0.004433048
      %v1308 = vmul.f32 %v1304, 0.004433048
      %v1309 = vmul.f32 %v1305, 0.004433048
      %v1310 = vmul.f32 %v1306, 0.004433048
      %1315 = vrot.lane.b32.xlu0 %v1307, 80
      %v1316 = vpop.permute.xlu0 %1315
      %1317 = vrot.lane.b32.xlu0 %v1308, 80
      %v1318 = vpop.permute.xlu0 %1317
      %1319 = vrot.lane.b32.xlu0 %v1309, 80
      %v1320 = vpop.permute.xlu0 %1319
      %1321 = vrot.lane.b32.xlu0 %v1310, 80
      %v1322 = vpop.permute.xlu0 %1321
      %v1323 = vsel %vm764, %v1316, %v1318
      %v1324 = vsel %vm764, %v1320, %v1322
      %v1331 = vadd.f32 %v1274, %v1316
      %v1332 = vadd.f32 %v1275, %v1323
      %v1333 = vadd.f32 %v1276, %v1318
      %v1334 = vadd.f32 %v1277, %v1320
      %v1335 = vadd.f32 %v1278, %v1324
      %v1336 = vadd.f32 %v1279, %v1322
      %v1337 = vpack.c.bf16 %v1334, %v1331
      %v1338 = vpack.c.bf16 %v1335, %v1332
      %v1339 = vpack.c.bf16 %v1336, %v1333
      %v1343 = vunpack.c.l.b16 %v1337
      %v1344 = vunpack.c.l.b16 %v1338
      %v1345 = vunpack.c.l.b16 %v1339
      %v1346 = vunpack.c.h.b16 %v1337
      %v1347 = vunpack.c.h.b16 %v1338
      %v1348 = vunpack.c.h.b16 %v1339
      %v1349 = vpack.c.b16 %v1344, %v1343
      %v1350 = vpack.c.b16 %v1345, %v1345
      %v1351 = vpack.c.b16 %v1347, %v1346
      %v1352 = vpack.c.b16 %v1348, %v1348
      %1353 = vrot.lane.b32.xlu0 %v1349, 48
      %v1354 = vpop.permute.xlu0 %1353
      %1355 = vrot.lane.b32.xlu0 %v1350, 48
      %v1356 = vpop.permute.xlu0 %1355
      %1357 = vrot.lane.b32.xlu0 %v1351, 48
      %v1358 = vpop.permute.xlu0 %1357
      %1359 = vrot.lane.b32.xlu0 %v1352, 48
      %v1360 = vpop.permute.xlu0 %1359
      %v1361 = vrot.slane %v1354, 4
      %v1362 = vrot.slane %v1356, 4
      %v1363 = vrot.slane %v1358, 4
      %v1364 = vrot.slane %v1360, 4
      %vm1365 = vcmask 1043456
      %v1366 = vsel %vm1365, %v1361, %v1362
      %vm1367 = vcmask 392192
      %v1368 = vsel %vm1367, %v1354, %v1366
      %v1369 = vsel %vm1365, %v1363, %v1364
      %v1370 = vsel %vm1367, %v1358, %v1369
      %1373 = vst [vmem:[%s217] sm:$0xff] %v1368
      %1374 = vst [vmem:[%s217 + $0x8] sm:$0xff] %v1370
      %p1375 = scmp.lt.s32.totalorder %s15, 1
      %s1376 = scalar_select %p1375, %s15, 1
      %s1377 = smul.addr %s1376, 4
      %s1378 = smul.addr %s1377, 4
      %s1379 = scalar_lea.vmem %s4, %s1378
      // Predicated region
      $region37: #{tgan_losses_g.2} parent=35 // pred_check
        %p1380 = pneg %p127
      $region38: #{tgan_losses_g.2} parent=35 // pred_check_branch
        %1382 = sbr.rel (%p1380) target = $region40
      $region39: #{tgan_losses_g.2} parent=35 // pred_region
        _
      $region40: #{tgan_losses_g.2} parent=35 // pred_fallthru
        _
    $region36: #{tgan_losses_g.2} parent=5 // pred_fallthru
      _
    %p1383 = scmp.le.s32.totalorder 2, %s10
    // Predicated region
    $region41: #{tgan_losses_g.2} parent=5 // pred_check
      %p1384 = pneg %p1383
    $region42: #{tgan_losses_g.2} parent=5 // pred_check_branch
      %1386 = sbr.rel (%p1384) target = $region44
    $region43: #{tgan_losses_g.2} parent=5 // pred_region
      %s1387 = ssub.s32 %s10, 2
      // Predicated region
      $region45: #{tgan_losses_g.2} parent=43 // pred_check
        %p1388 = pneg %p133
      $region46: #{tgan_losses_g.2} parent=43 // pred_check_branch
        %1390 = sbr.rel (%p1388) target = $region48
      $region47: #{tgan_losses_g.2} parent=43 // pred_region
        %p1391 = scmp.lt.s32.totalorder %s16, 1
        %s1392 = scalar_select %p1391, %s16, 1
        %s1393 = smul.addr %s1392, 4
        %s1394 = smul.addr %s1393, 4
        %s1395 = scalar_lea.vmem %s4, %s1394
      $region48: #{tgan_losses_g.2} parent=43 // pred_fallthru
        _
    $region44: #{tgan_losses_g.2} parent=5 // pred_fallthru
      _
  $region6: #{tgan_losses_g.2} parent=0 // loop_footer
    %s14 = sadd.s32 1, %s10
  $region7: #{tgan_losses_g.2} parent=0 // loop_footer_branch
    %9 = sbr.rel target = $region3
  $region8: #{tgan_losses_g.2} parent=0 // loop_exit
    _

// kernel: tgan_losses_g.3
$region0: #{tgan_losses_g.3}
  #allocation0 [shape = 'u32[]', space=smem, size = 0x4, offset = 0x4, fixed_abs, tag = 'smem constant byte address 0x4 - core index']
  #allocation1 [shape = 'u32[144,128]{1,0:T(1,128)}', space=vmem, size = 0x12000, scoped, tag = 'internal scratch']
  %s0 = inlined_call_operand.vmem [shape: f32[3,1], index: 0, kind: input, shape index: {}]
  %s1 = inlined_call_operand.vmem [shape: f32[3,1], index: 1, kind: input, shape index: {}]
  %s2 = inlined_call_operand.vmem [shape: f32[7,1], index: 2, kind: input, shape index: {}]
  %s3 = inlined_call_operand.vmem [shape: f32[7,1], index: 3, kind: input, shape index: {}]
  %s4 = inlined_call_operand.vmem [shape: f32[2,16,256], index: 4, kind: input, shape index: {}]
  %s5 = inlined_call_operand.vmem [shape: s32[2,16,256], index: 5, kind: input, shape index: {}]
  %s6 = inlined_call_operand.vmem [shape: bf16[2,16,256], index: 6, kind: input, shape index: {}]
  %s7 = inlined_call_operand.vmem [shape: f32[2,1,10], index: 7, kind: output, shape index: {}]
  %s8 = sld [smem:[#allocation0]]
  $region65: #{tgan_losses_g.3} parent=0
    _
  %s10 = ssub.s32 1, %s8
  %s11 = scalar_select 0, %s10, %s8
  loop: start=0, step=1, limit=6
  $region2: #{tgan_losses_g.3} parent=0 // loop_pre_header
    _
  $region3: #{tgan_losses_g.3} parent=0 // loop_header
    %s13 = sphi 0, %s17
    %p14 = scmp.ge.s32.totalorder %s13, 6
    %s20 = sphi 0, %s32
    %s21 = sphi 0, %s28
    %s22 = sphi 0, %s20
    %s23 = sphi 0, %s21
    %s24 = sphi 0, %s22
    %s25 = sphi 0, %s23
    %s33 = sphi 0, %s33
    %s35 = sphi 0, %s33
    %s36 = sphi 0, %s35
    %s50 = sphi 0, %s36
    %s54 = sphi 0, %s54
    %s56 = sphi 0, %s54
    %s57 = sphi 0, %s56
    %s71 = sphi 0, %s57
    %s75 = sphi 0, %s75
    %s77 = sphi 0, %s75
    %s78 = sphi 0, %s77
    %s92 = sphi 0, %s78
    %s96 = sphi 0, %s96
    %s98 = sphi 0, %s96
    %s99 = sphi 0, %s98
    %s113 = sphi 0, %s99
    %s121 = sphi 0, %s123
    %s124 = sphi 0, %s121
    %s125 = sphi 0, %s124
    %s141 = sphi 0, %s125
    %s149 = sphi 0, %s151
    %s152 = sphi 0, %s149
    %s153 = sphi 0, %s152
    %s169 = sphi 0, %s153
    %s177 = sphi 0, %s179
    %s180 = sphi 0, %s177
    %s181 = sphi 0, %s180
    %s197 = sphi 0, %s181
    %s203 = sphi 0, %s205
    %s206 = sphi 0, %s203
    %s207 = sphi 0, %s206
    %s223 = sphi 0, %s207
  $region4: #{tgan_losses_g.3} parent=0 // loop_header_branch
    %16 = sbr.rel (%p14) target = $region8
  $region5: #{tgan_losses_g.3} parent=0 // loop_body
    %s18 = ssub.s32 %s13, 1
    %s19 = ssub.s32 %s13, 2
    %s26 = sadd.s32 1, %s21
    %p27 = scmp.ge.s32.totalorder %s26, 2
    %s28 = scalar_select %p27, 0, %s26
    %s29 = sadd.s32 1, %s20
    %s30 = scalar_select %p27, %s29, %s20
    %p31 = scmp.ge.s32.totalorder %s30, 2
    %s32 = scalar_select %p31, 0, %s30
    %s34 = sadd.s32 %s33, 1
    %p37 = scmp.eq.s32.totalorder %s13, 3
    %p38 = scmp.ne.s32.totalorder %s33, %s35
    %p39 = scmp.eq.s32.totalorder %s13, 0
    %p40 = por %p38, %p39
    %p41 = scmp.ne.s32.totalorder %s33, %s35
    %p42 = scmp.eq.s32.totalorder %s18, 3
    %p43 = por %p41, %p42
    %p44 = scmp.ne.s32.totalorder %s35, %s36
    %p45 = scmp.eq.s32.totalorder %s18, 0
    %p46 = por %p44, %p45
    %p47 = scmp.ne.s32.totalorder %s35, %s36
    %p48 = scmp.eq.s32.totalorder %s19, 3
    %p49 = por %p47, %p48
    %p51 = scmp.ne.s32.totalorder %s36, %s50
    %p52 = scmp.eq.s32.totalorder %s19, 0
    %p53 = por %p51, %p52
    %s55 = sadd.s32 %s54, 1
    %p58 = scmp.eq.s32.totalorder %s13, 3
    %p59 = scmp.ne.s32.totalorder %s54, %s56
    %p60 = scmp.eq.s32.totalorder %s13, 0
    %p61 = por %p59, %p60
    %p62 = scmp.ne.s32.totalorder %s54, %s56
    %p63 = scmp.eq.s32.totalorder %s18, 3
    %p64 = por %p62, %p63
    %p65 = scmp.ne.s32.totalorder %s56, %s57
    %p66 = scmp.eq.s32.totalorder %s18, 0
    %p67 = por %p65, %p66
    %p68 = scmp.ne.s32.totalorder %s56, %s57
    %p69 = scmp.eq.s32.totalorder %s19, 3
    %p70 = por %p68, %p69
    %p72 = scmp.ne.s32.totalorder %s57, %s71
    %p73 = scmp.eq.s32.totalorder %s19, 0
    %p74 = por %p72, %p73
    %s76 = sadd.s32 %s75, 1
    %p79 = scmp.eq.s32.totalorder %s13, 3
    %p80 = scmp.ne.s32.totalorder %s75, %s77
    %p81 = scmp.eq.s32.totalorder %s13, 0
    %p82 = por %p80, %p81
    %p83 = scmp.ne.s32.totalorder %s75, %s77
    %p84 = scmp.eq.s32.totalorder %s18, 3
    %p85 = por %p83, %p84
    %p86 = scmp.ne.s32.totalorder %s77, %s78
    %p87 = scmp.eq.s32.totalorder %s18, 0
    %p88 = por %p86, %p87
    %p89 = scmp.ne.s32.totalorder %s77, %s78
    %p90 = scmp.eq.s32.totalorder %s19, 3
    %p91 = por %p89, %p90
    %p93 = scmp.ne.s32.totalorder %s78, %s92
    %p94 = scmp.eq.s32.totalorder %s19, 0
    %p95 = por %p93, %p94
    %s97 = sadd.s32 %s96, 1
    %p100 = scmp.eq.s32.totalorder %s13, 3
    %p101 = scmp.ne.s32.totalorder %s96, %s98
    %p102 = scmp.eq.s32.totalorder %s13, 0
    %p103 = por %p101, %p102
    %p104 = scmp.ne.s32.totalorder %s96, %s98
    %p105 = scmp.eq.s32.totalorder %s18, 3
    %p106 = por %p104, %p105
    %p107 = scmp.ne.s32.totalorder %s98, %s99
    %p108 = scmp.eq.s32.totalorder %s18, 0
    %p109 = por %p107, %p108
    %p110 = scmp.ne.s32.totalorder %s98, %s99
    %p111 = scmp.eq.s32.totalorder %s19, 3
    %p112 = por %p110, %p111
    %p114 = scmp.ne.s32.totalorder %s99, %s113
    %p115 = scmp.eq.s32.totalorder %s19, 0
    %p116 = por %p114, %p115
    %s117 = ssub.s32 %s20, %s32
    %s118 = ssub.s32 %s21, %s28
    %s119 = sor.u32 %s117, %s118
    %p120 = scmp.eq.s32.totalorder %s119, 0
    %s122 = sadd.s32 %s121, 1
    %s123 = scalar_select %p120, %s121, %s122
    %p126 = pneg %p120
    %p127 = scmp.eq.s32.totalorder %s13, 3
    %p128 = por %p126, %p127
    %p129 = scmp.ne.s32.totalorder %s121, %s124
    %p130 = scmp.eq.s32.totalorder %s13, 0
    %p131 = por %p129, %p130
    %p132 = scmp.ne.s32.totalorder %s121, %s124
    %p133 = scmp.eq.s32.totalorder %s18, 3
    %p134 = por %p132, %p133
    %p135 = scmp.ne.s32.totalorder %s124, %s125
    %p136 = scmp.eq.s32.totalorder %s18, 0
    %p137 = por %p135, %p136
    %p138 = scmp.ne.s32.totalorder %s124, %s125
    %p139 = scmp.eq.s32.totalorder %s19, 3
    %p140 = por %p138, %p139
    %p142 = scmp.ne.s32.totalorder %s125, %s141
    %p143 = scmp.eq.s32.totalorder %s19, 0
    %p144 = por %p142, %p143
    %s145 = ssub.s32 %s20, %s32
    %s146 = ssub.s32 %s21, %s28
    %s147 = sor.u32 %s145, %s146
    %p148 = scmp.eq.s32.totalorder %s147, 0
    %s150 = sadd.s32 %s149, 1
    %s151 = scalar_select %p148, %s149, %s150
    %p154 = pneg %p148
    %p155 = scmp.eq.s32.totalorder %s13, 3
    %p156 = por %p154, %p155
    %p157 = scmp.ne.s32.totalorder %s149, %s152
    %p158 = scmp.eq.s32.totalorder %s13, 0
    %p159 = por %p157, %p158
    %p160 = scmp.ne.s32.totalorder %s149, %s152
    %p161 = scmp.eq.s32.totalorder %s18, 3
    %p162 = por %p160, %p161
    %p163 = scmp.ne.s32.totalorder %s152, %s153
    %p164 = scmp.eq.s32.totalorder %s18, 0
    %p165 = por %p163, %p164
    %p166 = scmp.ne.s32.totalorder %s152, %s153
    %p167 = scmp.eq.s32.totalorder %s19, 3
    %p168 = por %p166, %p167
    %p170 = scmp.ne.s32.totalorder %s153, %s169
    %p171 = scmp.eq.s32.totalorder %s19, 0
    %p172 = por %p170, %p171
    %s173 = ssub.s32 %s20, %s32
    %s174 = ssub.s32 %s21, %s28
    %s175 = sor.u32 %s173, %s174
    %p176 = scmp.eq.s32.totalorder %s175, 0
    %s178 = sadd.s32 %s177, 1
    %s179 = scalar_select %p176, %s177, %s178
    %p182 = pneg %p176
    %p183 = scmp.eq.s32.totalorder %s13, 3
    %p184 = por %p182, %p183
    %p185 = scmp.ne.s32.totalorder %s177, %s180
    %p186 = scmp.eq.s32.totalorder %s13, 0
    %p187 = por %p185, %p186
    %p188 = scmp.ne.s32.totalorder %s177, %s180
    %p189 = scmp.eq.s32.totalorder %s18, 3
    %p190 = por %p188, %p189
    %p191 = scmp.ne.s32.totalorder %s180, %s181
    %p192 = scmp.eq.s32.totalorder %s18, 0
    %p193 = por %p191, %p192
    %p194 = scmp.ne.s32.totalorder %s180, %s181
    %p195 = scmp.eq.s32.totalorder %s19, 3
    %p196 = por %p194, %p195
    %p198 = scmp.ne.s32.totalorder %s181, %s197
    %p199 = scmp.eq.s32.totalorder %s19, 0
    %p200 = por %p198, %p199
    %s201 = ssub.s32 %s20, %s32
    %p202 = scmp.eq.s32.totalorder %s201, 0
    %s204 = sadd.s32 %s203, 1
    %s205 = scalar_select %p202, %s203, %s204
    %p208 = pneg %p202
    %p209 = scmp.eq.s32.totalorder %s13, 3
    %p210 = por %p208, %p209
    %p211 = scmp.ne.s32.totalorder %s203, %s206
    %p212 = scmp.eq.s32.totalorder %s13, 0
    %p213 = por %p211, %p212
    %p214 = scmp.ne.s32.totalorder %s203, %s206
    %p215 = scmp.eq.s32.totalorder %s18, 3
    %p216 = por %p214, %p215
    %p217 = scmp.ne.s32.totalorder %s206, %s207
    %p218 = scmp.eq.s32.totalorder %s18, 0
    %p219 = por %p217, %p218
    %p220 = scmp.ne.s32.totalorder %s206, %s207
    %p221 = scmp.eq.s32.totalorder %s19, 3
    %p222 = por %p220, %p221
    %p224 = scmp.ne.s32.totalorder %s207, %s223
    %p225 = scmp.eq.s32.totalorder %s19, 0
    %p226 = por %p224, %p225
    %p227 = scmp.le.s32.totalorder 1, %s13
    %p228 = scmp.lt.s32.totalorder %s13, 5
    %p229 = pnand %p227, %p228
    %p230 = pneg %p229
    // Predicated region
    $region9: #{tgan_losses_g.3} parent=5 // pred_check
      _
    $region10: #{tgan_losses_g.3} parent=5 // pred_check_branch
      %232 = sbr.rel (%p229) target = $region12
    $region11: #{tgan_losses_g.3} parent=5 // pred_region
      %s233 = ssub.s32 %s13, 1
      // Predicated region
      $region13: #{tgan_losses_g.3} parent=11 // pred_check
        %p234 = pneg %p46
      $region14: #{tgan_losses_g.3} parent=11 // pred_check_branch
        %236 = sbr.rel (%p234) target = $region16
      $region15: #{tgan_losses_g.3} parent=11 // pred_region
        _
      $region16: #{tgan_losses_g.3} parent=11 // pred_fallthru
        _
      // Predicated region
      $region17: #{tgan_losses_g.3} parent=11 // pred_check
        %p237 = pneg %p67
      $region18: #{tgan_losses_g.3} parent=11 // pred_check_branch
        %239 = sbr.rel (%p237) target = $region20
      $region19: #{tgan_losses_g.3} parent=11 // pred_region
        _
      $region20: #{tgan_losses_g.3} parent=11 // pred_fallthru
        _
      // Predicated region
      $region21: #{tgan_losses_g.3} parent=11 // pred_check
        %p240 = pneg %p88
      $region22: #{tgan_losses_g.3} parent=11 // pred_check_branch
        %242 = sbr.rel (%p240) target = $region24
      $region23: #{tgan_losses_g.3} parent=11 // pred_region
        _
      $region24: #{tgan_losses_g.3} parent=11 // pred_fallthru
        _
      // Predicated region
      $region25: #{tgan_losses_g.3} parent=11 // pred_check
        %p243 = pneg %p109
      $region26: #{tgan_losses_g.3} parent=11 // pred_check_branch
        %245 = sbr.rel (%p243) target = $region28
      $region27: #{tgan_losses_g.3} parent=11 // pred_region
        _
      $region28: #{tgan_losses_g.3} parent=11 // pred_fallthru
        _
    $region12: #{tgan_losses_g.3} parent=5 // pred_fallthru
      _
    %p246 = scmp.lt.s32.totalorder %s13, 4
    // Predicated region
    $region29: #{tgan_losses_g.3} parent=5 // pred_check
      %p247 = pneg %p246
    $region30: #{tgan_losses_g.3} parent=5 // pred_check_branch
      %249 = sbr.rel (%p247) target = $region32
    $region31: #{tgan_losses_g.3} parent=5 // pred_region
      // Predicated region
      $region33: #{tgan_losses_g.3} parent=31 // pred_check
        %p250 = pneg %p131
      $region34: #{tgan_losses_g.3} parent=31 // pred_check_branch
        %252 = sbr.rel (%p250) target = $region36
      $region35: #{tgan_losses_g.3} parent=31 // pred_region
        %p253 = scmp.lt.s32.totalorder %s20, 1
        %s254 = scalar_select %p253, %s20, 1
        %p255 = scmp.lt.s32.totalorder %s21, 1
        %s256 = scalar_select %p255, %s21, 1
        %s257 = smul.addr %s256, 2
        %s258 = smul.addr %s254, 4
        %s259 = sadd.s32 %s257, %s258
        %s260 = smul.addr %s259, 8
        %s261 = scalar_lea.vmem %s4, %s260
      $region36: #{tgan_losses_g.3} parent=31 // pred_fallthru
        _
      // Predicated region
      $region37: #{tgan_losses_g.3} parent=31 // pred_check
        %p262 = pneg %p159
      $region38: #{tgan_losses_g.3} parent=31 // pred_check_branch
        %264 = sbr.rel (%p262) target = $region40
      $region39: #{tgan_losses_g.3} parent=31 // pred_region
        %p265 = scmp.lt.s32.totalorder %s20, 1
        %s266 = scalar_select %p265, %s20, 1
        %p267 = scmp.lt.s32.totalorder %s21, 1
        %s268 = scalar_select %p267, %s21, 1
        %s269 = smul.addr %s268, 2
        %s270 = smul.addr %s266, 4
        %s271 = sadd.s32 %s269, %s270
        %s272 = smul.addr %s271, 8
        %s273 = scalar_lea.vmem %s5, %s272
      $region40: #{tgan_losses_g.3} parent=31 // pred_fallthru
        _
      // Predicated region
      $region41: #{tgan_losses_g.3} parent=31 // pred_check
        %p274 = pneg %p187
      $region42: #{tgan_losses_g.3} parent=31 // pred_check_branch
        %276 = sbr.rel (%p274) target = $region44
      $region43: #{tgan_losses_g.3} parent=31 // pred_region
        %p277 = scmp.lt.s32.totalorder %s20, 1
        %s278 = scalar_select %p277, %s20, 1
        %p279 = scmp.lt.s32.totalorder %s21, 1
        %s280 = scalar_select %p279, %s21, 1
        %s281 = smul.addr %s280, 2
        %s282 = smul.addr %s278, 4
        %s283 = sadd.s32 %s281, %s282
        %s284 = smul.addr %s283, 4
        %s285 = scalar_lea.vmem %s6, %s284
      $region44: #{tgan_losses_g.3} parent=31 // pred_fallthru
        _
    $region32: #{tgan_losses_g.3} parent=5 // pred_fallthru
      _
    %p286 = scmp.le.s32.totalorder 1, %s13
    %p287 = scmp.lt.s32.totalorder %s13, 5
    %p288 = pnand %p286, %p287
    %p289 = pneg %p288
    // Predicated region
    $region45: #{tgan_losses_g.3} parent=5 // pred_check
      _
    $region46: #{tgan_losses_g.3} parent=5 // pred_check_branch
      %291 = sbr.rel (%p288) target = $region48
    $region47: #{tgan_losses_g.3} parent=5 // pred_region
      %s292 = ssub.s32 %s13, 1
      %p293 = pneg %p46
      %p294 = pneg %p43
      %p295 = pneg %p67
      %p296 = pneg %p64
      %p297 = pneg %p88
      %p298 = pneg %p85
      %p299 = pneg %p109
      %p300 = pneg %p106
      %p301 = scmp.lt.s32.totalorder %s22, 1
      %s302 = scalar_select %p301, %s22, 1
      %p303 = scmp.lt.s32.totalorder %s23, 1
      %s304 = scalar_select %p303, %s23, 1
      %s305 = smul.addr %s304, 2
      %s306 = smul.addr %s302, 4
      %s307 = sadd.s32 %s305, %s306
      %s308 = smul.addr %s307, 8
      %s309 = scalar_lea.vmem %s4, %s308
      %p310 = pneg %p137
      %p311 = pneg %p134
      %p312 = scmp.lt.s32.totalorder %s22, 1
      %s313 = scalar_select %p312, %s22, 1
      %p314 = scmp.lt.s32.totalorder %s23, 1
      %s315 = scalar_select %p314, %s23, 1
      %s316 = smul.addr %s315, 2
      %s317 = smul.addr %s313, 4
      %s318 = sadd.s32 %s316, %s317
      %s319 = smul.addr %s318, 8
      %s320 = scalar_lea.vmem %s5, %s319
      %p321 = pneg %p165
      %p322 = pneg %p162
      %p323 = scmp.lt.s32.totalorder %s22, 1
      %s324 = scalar_select %p323, %s22, 1
      %p325 = scmp.lt.s32.totalorder %s23, 1
      %s326 = scalar_select %p325, %s23, 1
      %s327 = smul.addr %s326, 2
      %s328 = smul.addr %s324, 4
      %s329 = sadd.s32 %s327, %s328
      %s330 = smul.addr %s329, 4
      %s331 = scalar_lea.vmem %s6, %s330
      %p332 = pneg %p193
      %p333 = pneg %p190
      %p334 = pneg %p219
      %p335 = pneg %p216
      %p336 = scmp.lt.s32.totalorder %s22, 1
      %s337 = scalar_select %p336, %s22, 1
      %s338 = scalar_lea.vmem %s7, %s337
      %p339 = scmp.lt.s32.totalorder %s22, 1
      %s340 = scalar_select %p339, %s22, 1
      %p341 = scmp.lt.s32.totalorder %s23, 1
      %s342 = scalar_select %p341, %s23, 1
      %s343 = smul.addr %s342, 2
      %s344 = smul.addr %s340, 4
      %s345 = sadd.s32 %s343, %s344
      %s346 = smul.addr %s345, 8
      %s347 = scalar_lea.vmem %s4, %s346
      %p348 = scmp.lt.s32.totalorder %s22, 1
      %s349 = scalar_select %p348, %s22, 1
      %p350 = scmp.lt.s32.totalorder %s23, 1
      %s351 = scalar_select %p350, %s23, 1
      %s352 = smul.addr %s351, 2
      %s353 = smul.addr %s349, 4
      %s354 = sadd.s32 %s352, %s353
      %s355 = smul.addr %s354, 8
      %s356 = scalar_lea.vmem %s5, %s355
      %p357 = scmp.lt.s32.totalorder %s22, 1
      %s358 = scalar_select %p357, %s22, 1
      %p359 = scmp.lt.s32.totalorder %s23, 1
      %s360 = scalar_select %p359, %s23, 1
      %s361 = smul.addr %s360, 2
      %s362 = smul.addr %s358, 4
      %s363 = sadd.s32 %s361, %s362
      %s364 = smul.addr %s363, 4
      %s365 = scalar_lea.vmem %s6, %s364
      %p366 = scmp.lt.s32.totalorder %s22, 1
      %s367 = scalar_select %p366, %s22, 1
      %s368 = scalar_lea.vmem %s7, %s367
      %v369 = vld [vmem:[%s347] sm:$0xff]
      %v370 = vld [vmem:[%s347 + $0x8] sm:$0xff]
      %v371 = vld [vmem:[%s356] sm:$0xff]
      %v372 = vld [vmem:[%s356 + $0x8] sm:$0xff]
      %v373 = vld [vmem:[%s365] sm:$0xff]
      %v374 = vunpack.c.l.bf16 %v373
      %v375 = vunpack.c.h.bf16 %v373
      %vm376 = vcmp.eq.s32.totalorder %v371, 3
      %vm377 = vcmp.eq.s32.totalorder %v372, 3
      %vm378 = vcmp.eq.s32.totalorder %v371, 5
      %vm379 = vcmp.eq.s32.totalorder %v372, 5
      %vm380 = vmor %vm376, %vm378
      %vm381 = vmor %vm377, %vm379
      %v382 = vsel %vm380, 1, %v371
      %v383 = vsel %vm381, 1, %v372
      %vm384 = vcmp.eq.s32.totalorder %v371, 4
      %vm385 = vcmp.eq.s32.totalorder %v372, 4
      %vm386 = vcmp.eq.s32.totalorder %v371, 6
      %vm387 = vcmp.eq.s32.totalorder %v372, 6
      %vm388 = vmor %vm384, %vm386
      %vm389 = vmor %vm385, %vm387
      %v390 = vsel %vm388, 2, %v382
      %v391 = vsel %vm389, 2, %v383
      %v392 = vadd.f32 %v369, %v374
      %v393 = vadd.f32 %v370, %v375
      %vm394 = vcmp.gt.f32.partialorder %v374, 0.01
      %vm395 = vcmp.gt.f32.partialorder %v375, 0.01
      %v396 = vsel %vm394, 3, %v390
      %v397 = vsel %vm395, 3, %v391
      %vm398 = vcmp.eq.s32.totalorder %v396, 3
      %vm399 = vcmp.eq.s32.totalorder %v397, 3
      %v400 = vsel %vm398, 1, 0
      %v401 = vsel %vm399, 1, 0
      %v402 = vcvt.s32.f32 %v400
      %v403 = vcvt.s32.f32 %v401
      %v404 = vadd.f32 %v402, %v403
      %405 = vadd.xlane.f32.xlu0 %v404
      %v406 = vpop.xlane.xlu0 %405
      %v407 = vrot.slane %v406, 4
      %v408 = vadd.f32 %v406, %v407
      %v409 = vrot.slane %v408, 2
      %v410 = vadd.f32 %v408, %v409
      %v411 = vrot.slane %v410, 1
      %v412 = vadd.f32 %v410, %v411
      %s413 = vtos %v412
      %v414 = vld [vmem:[%s0] sm:$0x7]
      %v415 = vld [vmem:[%s1] sm:$0x7]
      %s417 = vtos %v414
      %v418 = vstv %s417
      %v420 = vmul.f32 %v418, %v392
      %v421 = vmul.f32 %v418, %v393
      %s423 = vtos %v415
      %v424 = vstv %s423
      %v426 = vadd.f32 %v420, %v424
      %v427 = vadd.f32 %v421, %v424
      %v428 = vrot.slane %v414, 1
      %s429 = vtos %v428
      %v430 = vstv %s429
      %v432 = vmul.f32 %v430, %v392
      %v433 = vmul.f32 %v430, %v393
      %v434 = vrot.slane %v415, 1
      %s435 = vtos %v434
      %v436 = vstv %s435
      %v438 = vadd.f32 %v432, %v436
      %v439 = vadd.f32 %v433, %v436
      %v440 = vrot.slane %v414, 2
      %s441 = vtos %v440
      %v442 = vstv %s441
      %v444 = vmul.f32 %v442, %v392
      %v445 = vmul.f32 %v442, %v393
      %v446 = vrot.slane %v415, 2
      %s447 = vtos %v446
      %v448 = vstv %s447
      %v450 = vadd.f32 %v444, %v448
      %v451 = vadd.f32 %v445, %v448
      %v452 = vmax.f32 %v426, %v438
      %v453 = vmax.f32 %v427, %v439
      %v454 = vmax.f32 %v452, %v450
      %v455 = vmax.f32 %v453, %v451
      %v456 = vsub.f32 %v426, %v454
      %v457 = vsub.f32 %v427, %v455
      %v458 = vmul.f32 %v456, 1.442695
      %v459 = vpow.pop %v458
      %v460 = vmul.f32 %v457, 1.442695
      %v461 = vpow.pop %v460
      %v462 = vsub.f32 %v438, %v454
      %v463 = vsub.f32 %v439, %v455
      %v464 = vmul.f32 %v462, 1.442695
      %v465 = vpow.pop %v464
      %v466 = vmul.f32 %v463, 1.442695
      %v467 = vpow.pop %v466
      %v468 = vsub.f32 %v450, %v454
      %v469 = vsub.f32 %v451, %v455
      %v470 = vmul.f32 %v468, 1.442695
      %v471 = vpow.pop %v470
      %v472 = vmul.f32 %v469, 1.442695
      %v473 = vpow.pop %v472
      %v474 = vadd.f32 %v459, %v465
      %v475 = vadd.f32 %v461, %v467
      %v476 = vadd.f32 %v474, %v471
      %v477 = vadd.f32 %v475, %v473
      %v478 = vrcp.pop %v476
      %v479 = vrcp.pop %v477
      %v480 = vmul.f32 %v465, %v478
      %v481 = vmul.f32 %v467, %v479
      %v482 = vmul.f32 %v480, %v402
      %v483 = vmul.f32 %v481, %v403
      %v484 = vadd.f32 %v482, %v483
      %485 = vadd.xlane.f32.xlu0 %v484
      %v486 = vpop.xlane.xlu0 %485
      %v487 = vrot.slane %v486, 4
      %v488 = vadd.f32 %v486, %v487
      %v489 = vrot.slane %v488, 2
      %v490 = vadd.f32 %v488, %v489
      %v491 = vrot.slane %v490, 1
      %v492 = vadd.f32 %v490, %v491
      %s493 = vtos %v492
      %v494 = vld [vmem:[%s2] sm:$0x7f]
      %v495 = vld [vmem:[%s3] sm:$0x7f]
      %s497 = vtos %v494
      %v498 = vstv %s497
      %v500 = vmul.f32 %v498, %v392
      %v501 = vmul.f32 %v498, %v393
      %s503 = vtos %v495
      %v504 = vstv %s503
      %v506 = vadd.f32 %v500, %v504
      %v507 = vadd.f32 %v501, %v504
      %v508 = vrot.slane %v494, 1
      %s509 = vtos %v508
      %v510 = vstv %s509
      %v512 = vmul.f32 %v510, %v392
      %v513 = vmul.f32 %v510, %v393
      %v514 = vrot.slane %v495, 1
      %s515 = vtos %v514
      %v516 = vstv %s515
      %v518 = vadd.f32 %v512, %v516
      %v519 = vadd.f32 %v513, %v516
      %v520 = vrot.slane %v494, 2
      %s521 = vtos %v520
      %v522 = vstv %s521
      %v524 = vmul.f32 %v522, %v392
      %v525 = vmul.f32 %v522, %v393
      %v526 = vrot.slane %v495, 2
      %s527 = vtos %v526
      %v528 = vstv %s527
      %v530 = vadd.f32 %v524, %v528
      %v531 = vadd.f32 %v525, %v528
      %v532 = vrot.slane %v494, 3
      %s533 = vtos %v532
      %v534 = vstv %s533
      %v536 = vmul.f32 %v534, %v392
      %v537 = vmul.f32 %v534, %v393
      %v538 = vrot.slane %v495, 3
      %s539 = vtos %v538
      %v540 = vstv %s539
      %v542 = vadd.f32 %v536, %v540
      %v543 = vadd.f32 %v537, %v540
      %v544 = vrot.slane %v494, 4
      %s545 = vtos %v544
      %v546 = vstv %s545
      %v548 = vmul.f32 %v546, %v392
      %v549 = vmul.f32 %v546, %v393
      %v550 = vrot.slane %v495, 4
      %s551 = vtos %v550
      %v552 = vstv %s551
      %v554 = vadd.f32 %v548, %v552
      %v555 = vadd.f32 %v549, %v552
      %v556 = vrot.slane %v494, 5
      %s557 = vtos %v556
      %v558 = vstv %s557
      %v560 = vmul.f32 %v558, %v392
      %v561 = vmul.f32 %v558, %v393
      %v562 = vrot.slane %v495, 5
      %s563 = vtos %v562
      %v564 = vstv %s563
      %v566 = vadd.f32 %v560, %v564
      %v567 = vadd.f32 %v561, %v564
      %v568 = vrot.slane %v494, 6
      %s569 = vtos %v568
      %v570 = vstv %s569
      %v572 = vmul.f32 %v570, %v392
      %v573 = vmul.f32 %v570, %v393
      %v574 = vrot.slane %v495, 6
      %s575 = vtos %v574
      %v576 = vstv %s575
      %v578 = vadd.f32 %v572, %v576
      %v579 = vadd.f32 %v573, %v576
      %v580 = vmax.f32 %v506, %v518
      %v581 = vmax.f32 %v507, %v519
      %v582 = vmax.f32 %v580, %v530
      %v583 = vmax.f32 %v581, %v531
      %v584 = vmax.f32 %v582, %v542
      %v585 = vmax.f32 %v583, %v543
      %v586 = vmax.f32 %v584, %v554
      %v587 = vmax.f32 %v585, %v555
      %v588 = vmax.f32 %v586, %v566
      %v589 = vmax.f32 %v587, %v567
      %v590 = vmax.f32 %v588, %v578
      %v591 = vmax.f32 %v589, %v579
      %v592 = vsub.f32 %v506, %v590
      %v593 = vsub.f32 %v507, %v591
      %v594 = vmul.f32 %v592, 1.442695
      %v595 = vpow.pop %v594
      %v596 = vmul.f32 %v593, 1.442695
      %v597 = vpow.pop %v596
      %v598 = vsub.f32 %v518, %v590
      %v599 = vsub.f32 %v519, %v591
      %v600 = vmul.f32 %v598, 1.442695
      %v601 = vpow.pop %v600
      %v602 = vmul.f32 %v599, 1.442695
      %v603 = vpow.pop %v602
      %v604 = vsub.f32 %v530, %v590
      %v605 = vsub.f32 %v531, %v591
      %v606 = vmul.f32 %v604, 1.442695
      %v607 = vpow.pop %v606
      %v608 = vmul.f32 %v605, 1.442695
      %v609 = vpow.pop %v608
      %v610 = vsub.f32 %v542, %v590
      %v611 = vsub.f32 %v543, %v591
      %v612 = vmul.f32 %v610, 1.442695
      %v613 = vpow.pop %v612
      %v614 = vmul.f32 %v611, 1.442695
      %v615 = vpow.pop %v614
      %v616 = vsub.f32 %v554, %v590
      %v617 = vsub.f32 %v555, %v591
      %v618 = vmul.f32 %v616, 1.442695
      %v619 = vpow.pop %v618
      %v620 = vmul.f32 %v617, 1.442695
      %v621 = vpow.pop %v620
      %v622 = vsub.f32 %v566, %v590
      %v623 = vsub.f32 %v567, %v591
      %v624 = vmul.f32 %v622, 1.442695
      %v625 = vpow.pop %v624
      %v626 = vmul.f32 %v623, 1.442695
      %v627 = vpow.pop %v626
      %v628 = vsub.f32 %v578, %v590
      %v629 = vsub.f32 %v579, %v591
      %v630 = vmul.f32 %v628, 1.442695
      %v631 = vpow.pop %v630
      %v632 = vmul.f32 %v629, 1.442695
      %v633 = vpow.pop %v632
      %v634 = vadd.f32 %v595, %v601
      %v635 = vadd.f32 %v597, %v603
      %v636 = vadd.f32 %v634, %v607
      %v637 = vadd.f32 %v635, %v609
      %v638 = vadd.f32 %v636, %v613
      %v639 = vadd.f32 %v637, %v615
      %v640 = vadd.f32 %v638, %v619
      %v641 = vadd.f32 %v639, %v621
      %v642 = vadd.f32 %v640, %v625
      %v643 = vadd.f32 %v641, %v627
      %v644 = vadd.f32 %v642, %v631
      %v645 = vadd.f32 %v643, %v633
      %v646 = vrcp.pop %v644
      %v647 = vrcp.pop %v645
      %v648 = vadd.f32 %v607, %v619
      %v649 = vadd.f32 %v609, %v621
      %v650 = vadd.f32 %v648, %v631
      %v651 = vadd.f32 %v649, %v633
      %v652 = vmul.f32 %v650, %v646
      %v653 = vmul.f32 %v651, %v647
      %v654 = vmul.f32 %v652, %v402
      %v655 = vmul.f32 %v653, %v403
      %v656 = vadd.f32 %v654, %v655
      %657 = vadd.xlane.f32.xlu0 %v656
      %v658 = vpop.xlane.xlu0 %657
      %v659 = vrot.slane %v658, 4
      %v660 = vadd.f32 %v658, %v659
      %v661 = vrot.slane %v660, 2
      %v662 = vadd.f32 %v660, %v661
      %v663 = vrot.slane %v662, 1
      %v664 = vadd.f32 %v662, %v663
      %s665 = vtos %v664
      %vm666 = vcmp.gt.f32.partialorder %v518, %v506
      %vm667 = vcmp.gt.f32.partialorder %v519, %v507
      %v668 = vsel %vm666, %v518, %v506
      %v669 = vsel %vm667, %v519, %v507
      %v670 = vsel %vm666, 1, 0
      %v671 = vsel %vm667, 1, 0
      %vm672 = vcmp.gt.f32.partialorder %v530, %v668
      %vm673 = vcmp.gt.f32.partialorder %v531, %v669
      %v674 = vsel %vm672, %v530, %v668
      %v675 = vsel %vm673, %v531, %v669
      %v676 = vsel %vm672, 2, %v670
      %v677 = vsel %vm673, 2, %v671
      %vm678 = vcmp.gt.f32.partialorder %v542, %v674
      %vm679 = vcmp.gt.f32.partialorder %v543, %v675
      %v680 = vsel %vm678, %v542, %v674
      %v681 = vsel %vm679, %v543, %v675
      %v682 = vsel %vm678, 3, %v676
      %v683 = vsel %vm679, 3, %v677
      %vm684 = vcmp.gt.f32.partialorder %v554, %v680
      %vm685 = vcmp.gt.f32.partialorder %v555, %v681
      %v686 = vsel %vm684, %v554, %v680
      %v687 = vsel %vm685, %v555, %v681
      %v688 = vsel %vm684, 4, %v682
      %v689 = vsel %vm685, 4, %v683
      %vm690 = vcmp.gt.f32.partialorder %v566, %v686
      %vm691 = vcmp.gt.f32.partialorder %v567, %v687
      %v692 = vsel %vm690, %v566, %v686
      %v693 = vsel %vm691, %v567, %v687
      %v694 = vsel %vm690, 5, %v688
      %v695 = vsel %vm691, 5, %v689
      %vm696 = vcmp.gt.f32.partialorder %v578, %v692
      %vm697 = vcmp.gt.f32.partialorder %v579, %v693
      %v698 = vsel %vm696, 6, %v694
      %v699 = vsel %vm697, 6, %v695
      %vm700 = vcmp.eq.s32.totalorder %v698, 3
      %vm701 = vcmp.eq.s32.totalorder %v699, 3
      %vm702 = vcmp.eq.s32.totalorder %v698, 5
      %vm703 = vcmp.eq.s32.totalorder %v699, 5
      %vm704 = vmor %vm700, %vm702
      %vm705 = vmor %vm701, %vm703
      %v706 = vsel %vm704, 1, %v698
      %v707 = vsel %vm705, 1, %v699
      %vm708 = vcmp.eq.s32.totalorder %v698, 4
      %vm709 = vcmp.eq.s32.totalorder %v699, 4
      %vm710 = vcmp.eq.s32.totalorder %v698, 6
      %vm711 = vcmp.eq.s32.totalorder %v699, 6
      %vm712 = vmor %vm708, %vm710
      %vm713 = vmor %vm709, %vm711
      %v714 = vsel %vm712, 2, %v706
      %v715 = vsel %vm713, 2, %v707
      %vm716 = vcmp.eq.s32.totalorder %v714, 2
      %vm717 = vcmp.eq.s32.totalorder %v715, 2
      %v718 = vsel %vm716, 1, 0
      %v719 = vsel %vm717, 1, 0
      %v720 = vcvt.s32.f32 %v718
      %v721 = vcvt.s32.f32 %v719
      %v722 = vmul.f32 %v402, %v720
      %v723 = vmul.f32 %v403, %v721
      %v724 = vadd.f32 %v722, %v723
      %725 = vadd.xlane.f32.xlu0 %v724
      %v726 = vpop.xlane.xlu0 %725
      %v727 = vrot.slane %v726, 4
      %v728 = vadd.f32 %v726, %v727
      %v729 = vrot.slane %v728, 2
      %v730 = vadd.f32 %v728, %v729
      %v731 = vrot.slane %v730, 1
      %v732 = vadd.f32 %v730, %v731
      %s733 = vtos %v732
      %vm734 = vcmp.ge.s32.totalorder %v396, 2
      %vm735 = vcmp.ge.s32.totalorder %v397, 2
      %v736 = vsel %vm734, 1, 0
      %v737 = vsel %vm735, 1, 0
      %v738 = vcvt.s32.f32 %v736
      %v739 = vcvt.s32.f32 %v737
      %v740 = vmul.f32 %v720, %v738
      %v741 = vmul.f32 %v721, %v739
      %v742 = vadd.f32 %v740, %v741
      %743 = vadd.xlane.f32.xlu0 %v742
      %v744 = vpop.xlane.xlu0 %743
      %v745 = vrot.slane %v744, 4
      %v746 = vadd.f32 %v744, %v745
      %v747 = vrot.slane %v746, 2
      %v748 = vadd.f32 %v746, %v747
      %v749 = vrot.slane %v748, 1
      %v750 = vadd.f32 %v748, %v749
      %s751 = vtos %v750
      %v752 = vadd.f32 %v720, %v721
      %753 = vadd.xlane.f32.xlu0 %v752
      %v754 = vpop.xlane.xlu0 %753
      %v755 = vrot.slane %v754, 4
      %v756 = vadd.f32 %v754, %v755
      %v757 = vrot.slane %v756, 2
      %v758 = vadd.f32 %v756, %v757
      %v759 = vrot.slane %v758, 1
      %v760 = vadd.f32 %v758, %v759
      %s761 = vtos %v760
      %v762 = vadd.f32 %v738, %v739
      %763 = vadd.xlane.f32.xlu0 %v762
      %v764 = vpop.xlane.xlu0 %763
      %v765 = vrot.slane %v764, 4
      %v766 = vadd.f32 %v764, %v765
      %v767 = vrot.slane %v766, 2
      %v768 = vadd.f32 %v766, %v767
      %v769 = vrot.slane %v768, 1
      %v770 = vadd.f32 %v768, %v769
      %s771 = vtos %v770
      %vm772 = vcmp.eq.s32.totalorder %v714, 1
      %vm773 = vcmp.eq.s32.totalorder %v715, 1
      %v774 = vsel %vm772, 1, 0
      %v775 = vsel %vm773, 1, 0
      %v776 = vcvt.s32.f32 %v774
      %v777 = vcvt.s32.f32 %v775
      %v778 = vadd.f32 %v776, %v777
      %779 = vadd.xlane.f32.xlu0 %v778
      %v780 = vpop.xlane.xlu0 %779
      %v781 = vrot.slane %v780, 4
      %v782 = vadd.f32 %v780, %v781
      %v783 = vrot.slane %v782, 2
      %v784 = vadd.f32 %v782, %v783
      %v785 = vrot.slane %v784, 1
      %v786 = vadd.f32 %v784, %v785
      %s787 = vtos %v786
      %v788 = vlaneseq
      %v789 = vand.u32 %v788, 127
      %vm790 = vcmp.eq.s32.totalorder %v789, 0
      %v791 = vstv %s493
      %v792 = vsel %vm790, %v791, 0.0
      %vm793 = vcmp.eq.s32.totalorder %v789, 1
      %v794 = vstv %s413
      %v795 = vsel %vm793, %v794, %v792
      %vm796 = vcmp.eq.s32.totalorder %v789, 2
      %v797 = vstv %s665
      %v798 = vsel %vm796, %v797, %v795
      %vm799 = vcmp.eq.s32.totalorder %v789, 3
      %v800 = vstv %s733
      %v801 = vsel %vm799, %v800, %v798
      %vm802 = vcmp.eq.s32.totalorder %v789, 4
      %v803 = vsel %vm802, 0.0, %v801
      %vm804 = vcmp.eq.s32.totalorder %v789, 5
      %v805 = vstv %s787
      %v806 = vsel %vm804, %v805, %v803
      %vm807 = vcmp.eq.s32.totalorder %v789, 6
      %v808 = vsel %vm807, 0.0, %v806
      %vm809 = vcmp.eq.s32.totalorder %v789, 7
      %v810 = vstv %s751
      %v811 = vsel %vm809, %v810, %v808
      %vm812 = vcmp.eq.s32.totalorder %v789, 8
      %v813 = vstv %s761
      %v814 = vsel %vm812, %v813, %v811
      %vm815 = vcmp.eq.s32.totalorder %v789, 9
      %v816 = vstv %s771
      %v817 = vsel %vm815, %v816, %v814
      %p818 = scmp.eq.s32.totalorder %s23, 0
      // Predicated region
      $region49: #{tgan_losses_g.3} parent=47 // pred_check
        %p819 = pneg %p818
      $region50: #{tgan_losses_g.3} parent=47 // pred_check_branch
        %821 = sbr.rel (%p819) target = $region52
      $region51: #{tgan_losses_g.3} parent=47 // pred_region
        %vm822 = vcmask 73728
        %823 = vst.msk [vmem:[%s368] sm:$0x1] %vm822, 0.0
      $region52: #{tgan_losses_g.3} parent=47 // pred_fallthru
        _
      %v824 = vld [vmem:[%s368] sm:$0x1]
      %v825 = vadd.f32 %v824, %v817
      %vm826 = vcmask 73728
      %827 = vst.msk [vmem:[%s368] sm:$0x1] %vm826, %v825
      %p828 = scmp.lt.s32.totalorder %s22, 1
      %s829 = scalar_select %p828, %s22, 1
      %s830 = scalar_lea.vmem %s7, %s829
      // Predicated region
      $region53: #{tgan_losses_g.3} parent=47 // pred_check
        %p831 = pneg %p216
      $region54: #{tgan_losses_g.3} parent=47 // pred_check_branch
        %833 = sbr.rel (%p831) target = $region56
      $region55: #{tgan_losses_g.3} parent=47 // pred_region
        _
      $region56: #{tgan_losses_g.3} parent=47 // pred_fallthru
        _
    $region48: #{tgan_losses_g.3} parent=5 // pred_fallthru
      _
    %p834 = scmp.le.s32.totalorder 2, %s13
    // Predicated region
    $region57: #{tgan_losses_g.3} parent=5 // pred_check
      %p835 = pneg %p834
    $region58: #{tgan_losses_g.3} parent=5 // pred_check_branch
      %837 = sbr.rel (%p835) target = $region60
    $region59: #{tgan_losses_g.3} parent=5 // pred_region
      %s838 = ssub.s32 %s13, 2
      // Predicated region
      $region61: #{tgan_losses_g.3} parent=59 // pred_check
        %p839 = pneg %p222
      $region62: #{tgan_losses_g.3} parent=59 // pred_check_branch
        %841 = sbr.rel (%p839) target = $region64
      $region63: #{tgan_losses_g.3} parent=59 // pred_region
        %p842 = scmp.lt.s32.totalorder %s24, 1
        %s843 = scalar_select %p842, %s24, 1
        %s844 = scalar_lea.vmem %s7, %s843
      $region64: #{tgan_losses_g.3} parent=59 // pred_fallthru
        _
    $region60: #{tgan_losses_g.3} parent=5 // pred_fallthru
      _
  $region6: #{tgan_losses_g.3} parent=0 // loop_footer
    %s17 = sadd.s32 1, %s13
  $region7: #{tgan_losses_g.3} parent=0 // loop_footer_branch
    %12 = sbr.rel target = $region3
  $region8: #{tgan_losses_g.3} parent=0 // loop_exit
    _

</llo_original>
